<compile_context>
chip_gen: v5e
topology: v5e:2x2
jax: 0.10.0
libtpu: 0.0.40
codegen_flags: <defaults>
</compile_context>

<pallas_src>
import math

import jax
import jax.numpy as jnp
from jax import lax
from jax.experimental import pallas as pl
from jax.experimental.pallas import tpu as pltpu


# ----------------------------------------------------------------------------
# Kernel
# ----------------------------------------------------------------------------
def _make_bigru_kernel(T, B, H, unroll):
    """Fused bidirectional single-layer GRU over the whole sequence."""
    H2, H3 = 2 * H, 3 * H

    def kernel(x_ref, wih_ref, whh_ref, bih_ref, bhh_ref, h0_ref,
               out_ref, hn_ref, gi_ref, outb_ref):
        # ---- Phase 1: hoisted input projection ------------------------------
        # One (T*B, E) @ (E, 3H) dot per direction; gates are lane-packed in
        # torch order [r|z|n], b_ih folded in.  Never touches the serial path.
        x = x_ref[...]                                       # (T*B, E) f32
        for d in range(2):
            gi_ref[d] = (jnp.dot(x, wih_ref[d],
                                 preferred_element_type=jnp.float32)
                         + bih_ref[d])

        # ---- Loop-invariant operands, loaded once ----------------------------
        wh = [whh_ref[0], whh_ref[1]]        # (H, 3H) each
        bh = [bhh_ref[0], bhh_ref[1]]        # (1, 3H) each

        def gru_cell(h, gi, w, b):
            # Single fused hidden dot; full b_hh added here so the n-gate
            # hidden bias lands inside r * (...) exactly like nn.GRU.
            gh = jnp.dot(h, w, preferred_element_type=jnp.float32) + b  # (B,3H)
            rz = jax.nn.sigmoid(gi[:, :H2] + gh[:, :H2])   # one EUP pass for r,z
            r = rz[:, :H]
            z = rz[:, H:H2]
            n = jnp.tanh(gi[:, H2:H3] + r * gh[:, H2:H3])
            return (1.0 - z) * n + z * h

        # ---- Phase 2: the sequential recurrence (both directions fused) ------
        def step(t, carry):
            h_f, h_b = carry
            tf = t * B                  # forward reads/writes time t
            tb = (T - 1 - t) * B        # backward reads/writes time T-1-t

            h_f = gru_cell(h_f, gi_ref[0, pl.ds(tf, B), :], wh[0], bh[0])
            h_b = gru_cell(h_b, gi_ref[1, pl.ds(tb, B), :], wh[1], bh[1])

            # forward half goes straight into the lane-dense output slab
            out_ref[pl.ds(tf, B), 0:H] = h_f
            # backward half accumulates in a scratch slab (lanes 0:H, no
            # per-step lane rotate); relaid out once after the loop.
            outb_ref[pl.ds(tb, B), :] = h_b
            return (h_f, h_b)

        h_f, h_b = lax.fori_loop(0, T, step, (h0_ref[0], h0_ref[1]),
                                 unroll=unroll)

        # One-time relayout of the backward half into lanes [H:2H].
        out_ref[:, H:H2] = outb_ref[...]
        hn_ref[0] = h_f
        hn_ref[1] = h_b

    return kernel


# ----------------------------------------------------------------------------
# Host-side packing (one-time): torch nn.GRU layout -> kernel layout
# ----------------------------------------------------------------------------
def pack_encoder_params(params):
    """Pre-transpose the GRU weights for the kernel.

    Torch stores W_ih as (3H, E) with gate rows ordered [r; z; n], so W_ih.T
    is already the lane-packed (E, 3H) layout the kernel wants.

    Returns:
      wih : (2, E, 3H)   per-direction W_ih^T (gates packed on lanes)
      whh : (2, H, 3H)   per-direction W_hh^T (gates packed on lanes)
      bih : (2, 1, 3H)   b_ih (folded into the hoisted input projection)
      bhh : (2, 1, 3H)   b_hh (added to the per-step hidden projection)
    """
    def b2(b):
        return b.reshape(1, -1)

    wih = jnp.stack([params["w_ih_f"].T, params["w_ih_b"].T])
    whh = jnp.stack([params["w_hh_f"].T, params["w_hh_b"].T])
    bih = jnp.stack([b2(params["b_ih_f"]), b2(params["b_ih_b"])])
    bhh = jnp.stack([b2(params["b_hh_f"]), b2(params["b_hh_b"])])
    return {"wih": wih, "whh": whh, "bih": bih, "bhh": bhh}


# ----------------------------------------------------------------------------
# Forward wrapper (Encoder.forward equivalent)
# ----------------------------------------------------------------------------
def encoder_forward(x, packed, hidden=None):
    """Bidirectional 1-layer GRU. x: (T, B, E). Returns (output, h_n)."""
    T, B, E = x.shape
    H = packed["whh"].shape[1]
    if hidden is None:
        h0 = jnp.zeros((2, B, H), jnp.float32)
    else:
        h0 = jnp.asarray(hidden, jnp.float32)

    x2d = x.reshape(T * B, E).astype(jnp.float32)
    unroll = T <= 32  # fully unroll the recurrence for short sequences

    kernel = _make_bigru_kernel(T, B, H, unroll)
    vspec = pl.BlockSpec(memory_space=pltpu.MemorySpace.VMEM)

    out2d, h_n = pl.pallas_call(
        kernel,
        out_shape=(jax.ShapeDtypeStruct((T * B, 2 * H), jnp.float32),
                   jax.ShapeDtypeStruct((2, B, H), jnp.float32)),
        in_specs=[vspec] * 6,
        out_specs=(vspec, vspec),
        scratch_shapes=[
            pltpu.VMEM((2, T * B, 3 * H), jnp.float32),   # hoisted gi (lane-packed gates)
            pltpu.VMEM((T * B, H), jnp.float32),          # backward output slab
        ],
    )(x2d, packed["wih"], packed["whh"], packed["bih"], packed["bhh"], h0)

    output = out2d.reshape(T, B, 2 * H)   # free reshape, no concat pass
    return output, h_n


def init_encoder_params(key, embedding_dim, hidden_dim):
    """Deterministic params matching nn.GRU's uniform(-1/sqrt(H), 1/sqrt(H)) init."""
    scale = 1.0 / math.sqrt(hidden_dim)
    keys = jax.random.split(key, 8)

    def u(k, shape):
        return jax.random.uniform(k, shape, jnp.float32, -scale, scale)

    H, E = hidden_dim, embedding_dim
    return {
        "w_ih_f": u(keys[0], (3 * H, E)), "w_hh_f": u(keys[1], (3 * H, H)),
        "b_ih_f": u(keys[2], (3 * H,)),   "b_hh_f": u(keys[3], (3 * H,)),
        "w_ih_b": u(keys[4], (3 * H, E)), "w_hh_b": u(keys[5], (3 * H, H)),
        "b_ih_b": u(keys[6], (3 * H,)),   "b_hh_b": u(keys[7], (3 * H,)),
    }


# ----------------------------------------------------------------------------
# Pure-JAX reference (torch-layout params) for the correctness check
# ----------------------------------------------------------------------------
def _gru_reference(x, w_ih, w_hh, b_ih, b_hh, h0, reverse):
    H = w_hh.shape[1]
    xs = x[::-1] if reverse else x

    def step(h, xt):
        gi = xt @ w_ih.T + b_ih
        gh = h @ w_hh.T + b_hh
        r = jax.nn.sigmoid(gi[:, :H] + gh[:, :H])
        z = jax.nn.sigmoid(gi[:, H:2 * H] + gh[:, H:2 * H])
        n = jnp.tanh(gi[:, 2 * H:] + r * gh[:, 2 * H:])
        h_new = (1 - z) * n + z * h
        return h_new, h_new

    h_n, outs = jax.lax.scan(step, h0, xs)
    if reverse:
        outs = outs[::-1]
    return outs, h_n


if __name__ == "__main__":
    # Small shapes consistent with the module: seq=8, batch=2, embed=32, hidden=32
    T, B, E, H = 8, 2, 32, 32

    key = jax.random.PRNGKey(0)
    k_x, k_p = jax.random.split(key)
    x = jax.random.normal(k_x, (T, B, E), jnp.float32)
    params = init_encoder_params(k_p, E, H)
    packed = pack_encoder_params(params)   # one-time host-side packing

    fwd = jax.jit(encoder_forward)
    output, h_n = jax.block_until_ready(fwd(x, packed))
    assert output.shape == (T, B, 2 * H)
    assert h_n.shape == (2, B, H)

    # Cross-check against a pure-JAX reference GRU.
    ref_f, ref_hf = _gru_reference(
        x, params["w_ih_f"], params["w_hh_f"], params["b_ih_f"], params["b_hh_f"],
        jnp.zeros((B, H), jnp.float32), reverse=False)
    ref_b, ref_hb = _gru_reference(
        x, params["w_ih_b"], params["w_hh_b"], params["b_ih_b"], params["b_hh_b"],
        jnp.zeros((B, H), jnp.float32), reverse=True)
    ref_out = jnp.concatenate([ref_f, ref_b], axis=-1)
    ref_hn = jnp.stack([ref_hf, ref_hb], axis=0)

    assert jnp.allclose(output, ref_out, atol=3e-5, rtol=1e-5)
    assert jnp.allclose(h_n, ref_hn, atol=3e-5, rtol=1e-5)

    print("KERNEL_OK")
</pallas_src>

<mosaic_0001>
module attributes {stable_mosaic.version = 11 : i64} {
  func.func @kernel(%arg0: memref<16x32xf32, #tpu.memory_space<vmem>>, %arg1: memref<2x32x96xf32, #tpu.memory_space<vmem>>, %arg2: memref<2x32x96xf32, #tpu.memory_space<vmem>>, %arg3: memref<2x1x96xf32, #tpu.memory_space<vmem>>, %arg4: memref<2x1x96xf32, #tpu.memory_space<vmem>>, %arg5: memref<2x2x32xf32, #tpu.memory_space<vmem>>, %arg6: memref<16x64xf32, #tpu.memory_space<vmem>>, %arg7: memref<2x2x32xf32, #tpu.memory_space<vmem>>, %arg8: memref<2x16x96xf32, #tpu.memory_space<vmem>>, %arg9: memref<16x32xf32, #tpu.memory_space<vmem>>) attributes {dimension_semantics = [], scalar_prefetch = 0 : i64, scratch_operands = 2 : i64, tpu.core_type = #tpu.core_type<tc>} {
    %c0 = arith.constant 0 : index
    %c0_0 = arith.constant 0 : index
    %0 = vector.load %arg0[%c0, %c0_0] : memref<16x32xf32, #tpu.memory_space<vmem>>, vector<16x32xf32>
    %c0_1 = arith.constant 0 : index
    %c0_2 = arith.constant 0 : index
    %c0_3 = arith.constant 0 : index
    %1 = vector.load %arg1[%c0_1, %c0_2, %c0_3] : memref<2x32x96xf32, #tpu.memory_space<vmem>>, vector<1x32x96xf32>
    %2 = vector.shape_cast %1 : vector<1x32x96xf32> to vector<32x96xf32>
    %cst = arith.constant dense<0.000000e+00> : vector<16x96xf32>
    %3 = tpu.matmul %0, %2, %cst {dimension_numbers = #tpu.dot_dimension_numbers<[1], [0], [0], [1], [0, 0, 1, 1], [], []>} : vector<16x32xf32>, vector<32x96xf32>, vector<16x96xf32> -> vector<16x96xf32>
    %c0_4 = arith.constant 0 : index
    %c0_5 = arith.constant 0 : index
    %c0_6 = arith.constant 0 : index
    %4 = vector.load %arg3[%c0_4, %c0_5, %c0_6] : memref<2x1x96xf32, #tpu.memory_space<vmem>>, vector<1x1x96xf32>
    %5 = vector.shape_cast %4 : vector<1x1x96xf32> to vector<1x96xf32>
    %6 = vector.broadcast %5 : vector<1x96xf32> to vector<16x96xf32>
    %7 = arith.addf %3, %6 : vector<16x96xf32>
    %c0_7 = arith.constant 0 : index
    %c0_8 = arith.constant 0 : index
    %c0_9 = arith.constant 0 : index
    %8 = vector.load %arg8[%c0_7, %c0_8, %c0_9] : memref<2x16x96xf32, #tpu.memory_space<vmem>>, vector<1x16x96xf32>
    %9 = vector.shape_cast %8 : vector<1x16x96xf32> to vector<16x96xf32>
    %10 = vector.shape_cast %7 : vector<16x96xf32> to vector<1x16x96xf32>
    tpu.vector_store %arg8[%c0_7, %c0_8, %c0_9], %10 {strides = array<i32>} : memref<2x16x96xf32, #tpu.memory_space<vmem>>, vector<1x16x96xf32>,
    %c1 = arith.constant 1 : index
    %c0_10 = arith.constant 0 : index
    %c0_11 = arith.constant 0 : index
    %11 = vector.load %arg1[%c1, %c0_10, %c0_11] : memref<2x32x96xf32, #tpu.memory_space<vmem>>, vector<1x32x96xf32>
    %12 = vector.shape_cast %11 : vector<1x32x96xf32> to vector<32x96xf32>
    %cst_12 = arith.constant dense<0.000000e+00> : vector<16x96xf32>
    %13 = tpu.matmul %0, %12, %cst_12 {dimension_numbers = #tpu.dot_dimension_numbers<[1], [0], [0], [1], [0, 0, 1, 1], [], []>} : vector<16x32xf32>, vector<32x96xf32>, vector<16x96xf32> -> vector<16x96xf32>
    %c1_13 = arith.constant 1 : index
    %c0_14 = arith.constant 0 : index
    %c0_15 = arith.constant 0 : index
    %14 = vector.load %arg3[%c1_13, %c0_14, %c0_15] : memref<2x1x96xf32, #tpu.memory_space<vmem>>, vector<1x1x96xf32>
    %15 = vector.shape_cast %14 : vector<1x1x96xf32> to vector<1x96xf32>
    %16 = vector.broadcast %15 : vector<1x96xf32> to vector<16x96xf32>
    %17 = arith.addf %13, %16 : vector<16x96xf32>
    %c1_16 = arith.constant 1 : index
    %c0_17 = arith.constant 0 : index
    %c0_18 = arith.constant 0 : index
    %18 = vector.load %arg8[%c1_16, %c0_17, %c0_18] : memref<2x16x96xf32, #tpu.memory_space<vmem>>, vector<1x16x96xf32>
    %19 = vector.shape_cast %18 : vector<1x16x96xf32> to vector<16x96xf32>
    %20 = vector.shape_cast %17 : vector<16x96xf32> to vector<1x16x96xf32>
    tpu.vector_store %arg8[%c1_16, %c0_17, %c0_18], %20 {strides = array<i32>} : memref<2x16x96xf32, #tpu.memory_space<vmem>>, vector<1x16x96xf32>,
    %c0_19 = arith.constant 0 : index
    %c0_20 = arith.constant 0 : index
    %c0_21 = arith.constant 0 : index
    %21 = vector.load %arg2[%c0_19, %c0_20, %c0_21] : memref<2x32x96xf32, #tpu.memory_space<vmem>>, vector<1x32x96xf32>
    %22 = vector.shape_cast %21 : vector<1x32x96xf32> to vector<32x96xf32>
    %c1_22 = arith.constant 1 : index
    %c0_23 = arith.constant 0 : index
    %c0_24 = arith.constant 0 : index
    %23 = vector.load %arg2[%c1_22, %c0_23, %c0_24] : memref<2x32x96xf32, #tpu.memory_space<vmem>>, vector<1x32x96xf32>
    %24 = vector.shape_cast %23 : vector<1x32x96xf32> to vector<32x96xf32>
    %c0_25 = arith.constant 0 : index
    %c0_26 = arith.constant 0 : index
    %c0_27 = arith.constant 0 : index
    %25 = vector.load %arg4[%c0_25, %c0_26, %c0_27] : memref<2x1x96xf32, #tpu.memory_space<vmem>>, vector<1x1x96xf32>
    %26 = vector.shape_cast %25 : vector<1x1x96xf32> to vector<1x96xf32>
    %c1_28 = arith.constant 1 : index
    %c0_29 = arith.constant 0 : index
    %c0_30 = arith.constant 0 : index
    %27 = vector.load %arg4[%c1_28, %c0_29, %c0_30] : memref<2x1x96xf32, #tpu.memory_space<vmem>>, vector<1x1x96xf32>
    %28 = vector.shape_cast %27 : vector<1x1x96xf32> to vector<1x96xf32>
    %c0_31 = arith.constant 0 : index
    %c0_32 = arith.constant 0 : index
    %c0_33 = arith.constant 0 : index
    %29 = vector.load %arg5[%c0_31, %c0_32, %c0_33] : memref<2x2x32xf32, #tpu.memory_space<vmem>>, vector<1x2x32xf32>
    %30 = vector.shape_cast %29 : vector<1x2x32xf32> to vector<2x32xf32>
    %c1_34 = arith.constant 1 : index
    %c0_35 = arith.constant 0 : index
    %c0_36 = arith.constant 0 : index
    %31 = vector.load %arg5[%c1_34, %c0_35, %c0_36] : memref<2x2x32xf32, #tpu.memory_space<vmem>>, vector<1x2x32xf32>
    %32 = vector.shape_cast %31 : vector<1x2x32xf32> to vector<2x32xf32>
    %c0_i32 = arith.constant 0 : i32
    %c2_i32 = arith.constant 2 : i32
    %33 = arith.muli %c0_i32, %c2_i32 : i32
    %c7_i32 = arith.constant 7 : i32
    %34 = arith.subi %c7_i32, %c0_i32 : i32
    %c2_i32_37 = arith.constant 2 : i32
    %35 = arith.muli %34, %c2_i32_37 : i32
    %c0_38 = arith.constant 0 : index
    %36 = arith.index_cast %33 : i32 to index
    %c0_39 = arith.constant 0 : index
    %37 = vector.load %arg8[%c0_38, %36, %c0_39] : memref<2x16x96xf32, #tpu.memory_space<vmem>>, vector<1x2x96xf32>
    %38 = vector.shape_cast %37 : vector<1x2x96xf32> to vector<2x96xf32>
    %cst_40 = arith.constant dense<0.000000e+00> : vector<2x96xf32>
    %39 = tpu.matmul %30, %22, %cst_40 {dimension_numbers = #tpu.dot_dimension_numbers<[1], [0], [0], [1], [0, 0, 1, 1], [], []>} : vector<2x32xf32>, vector<32x96xf32>, vector<2x96xf32> -> vector<2x96xf32>
    %40 = vector.broadcast %26 : vector<1x96xf32> to vector<2x96xf32>
    %41 = arith.addf %39, %40 : vector<2x96xf32>
    %42 = vector.extract_strided_slice %38 {offsets = [0, 0], sizes = [2, 64], strides = [1, 1]} : vector<2x96xf32> to vector<2x64xf32>
    %43 = vector.extract_strided_slice %41 {offsets = [0, 0], sizes = [2, 64], strides = [1, 1]} : vector<2x96xf32> to vector<2x64xf32>
    %44 = arith.addf %42, %43 : vector<2x64xf32>
    %45 = arith.negf %44 : vector<2x64xf32>
    %46 = math.exp %45 : vector<2x64xf32>
    %cst_41 = arith.constant 1.000000e+00 : f32
    %47 = vector.broadcast %cst_41 : f32 to vector<2x64xf32>
    %48 = arith.addf %47, %46 : vector<2x64xf32>
    %49 = arith.divf %47, %48 : vector<2x64xf32>
    %50 = vector.extract_strided_slice %49 {offsets = [0, 0], sizes = [2, 32], strides = [1, 1]} : vector<2x64xf32> to vector<2x32xf32>
    %51 = vector.extract_strided_slice %49 {offsets = [0, 32], sizes = [2, 32], strides = [1, 1]} : vector<2x64xf32> to vector<2x32xf32>
    %52 = vector.extract_strided_slice %38 {offsets = [0, 64], sizes = [2, 32], strides = [1, 1]} : vector<2x96xf32> to vector<2x32xf32>
    %53 = vector.extract_strided_slice %41 {offsets = [0, 64], sizes = [2, 32], strides = [1, 1]} : vector<2x96xf32> to vector<2x32xf32>
    %54 = arith.mulf %50, %53 : vector<2x32xf32>
    %55 = arith.addf %52, %54 : vector<2x32xf32>
    %56 = math.tanh %55 : vector<2x32xf32>
    %cst_42 = arith.constant 1.000000e+00 : f32
    %57 = vector.broadcast %cst_42 : f32 to vector<2x32xf32>
    %58 = arith.subf %57, %51 : vector<2x32xf32>
    %59 = arith.mulf %58, %56 : vector<2x32xf32>
    %60 = arith.mulf %51, %30 : vector<2x32xf32>
    %61 = arith.addf %59, %60 : vector<2x32xf32>
    %c1_43 = arith.constant 1 : index
    %62 = arith.index_cast %35 : i32 to index
    %c0_44 = arith.constant 0 : index
    %63 = vector.load %arg8[%c1_43, %62, %c0_44] : memref<2x16x96xf32, #tpu.memory_space<vmem>>, vector<1x2x96xf32>
    %64 = vector.shape_cast %63 : vector<1x2x96xf32> to vector<2x96xf32>
    %cst_45 = arith.constant dense<0.000000e+00> : vector<2x96xf32>
    %65 = tpu.matmul %32, %24, %cst_45 {dimension_numbers = #tpu.dot_dimension_numbers<[1], [0], [0], [1], [0, 0, 1, 1], [], []>} : vector<2x32xf32>, vector<32x96xf32>, vector<2x96xf32> -> vector<2x96xf32>
    %66 = vector.broadcast %28 : vector<1x96xf32> to vector<2x96xf32>
    %67 = arith.addf %65, %66 : vector<2x96xf32>
    %68 = vector.extract_strided_slice %64 {offsets = [0, 0], sizes = [2, 64], strides = [1, 1]} : vector<2x96xf32> to vector<2x64xf32>
    %69 = vector.extract_strided_slice %67 {offsets = [0, 0], sizes = [2, 64], strides = [1, 1]} : vector<2x96xf32> to vector<2x64xf32>
    %70 = arith.addf %68, %69 : vector<2x64xf32>
    %71 = arith.negf %70 : vector<2x64xf32>
    %72 = math.exp %71 : vector<2x64xf32>
    %cst_46 = arith.constant 1.000000e+00 : f32
    %73 = vector.broadcast %cst_46 : f32 to vector<2x64xf32>
    %74 = arith.addf %73, %72 : vector<2x64xf32>
    %75 = arith.divf %73, %74 : vector<2x64xf32>
    %76 = vector.extract_strided_slice %75 {offsets = [0, 0], sizes = [2, 32], strides = [1, 1]} : vector<2x64xf32> to vector<2x32xf32>
    %77 = vector.extract_strided_slice %75 {offsets = [0, 32], sizes = [2, 32], strides = [1, 1]} : vector<2x64xf32> to vector<2x32xf32>
    %78 = vector.extract_strided_slice %64 {offsets = [0, 64], sizes = [2, 32], strides = [1, 1]} : vector<2x96xf32> to vector<2x32xf32>
    %79 = vector.extract_strided_slice %67 {offsets = [0, 64], sizes = [2, 32], strides = [1, 1]} : vector<2x96xf32> to vector<2x32xf32>
    %80 = arith.mulf %76, %79 : vector<2x32xf32>
    %81 = arith.addf %78, %80 : vector<2x32xf32>
    %82 = math.tanh %81 : vector<2x32xf32>
    %cst_47 = arith.constant 1.000000e+00 : f32
    %83 = vector.broadcast %cst_47 : f32 to vector<2x32xf32>
    %84 = arith.subf %83, %77 : vector<2x32xf32>
    %85 = arith.mulf %84, %82 : vector<2x32xf32>
    %86 = arith.mulf %77, %32 : vector<2x32xf32>
    %87 = arith.addf %85, %86 : vector<2x32xf32>
    %88 = arith.index_cast %33 : i32 to index
    %c0_48 = arith.constant 0 : index
    %89 = vector.load %arg6[%88, %c0_48] : memref<16x64xf32, #tpu.memory_space<vmem>>, vector<2x32xf32>
    tpu.vector_store %arg6[%88, %c0_48], %61 {strides = array<i32>} : memref<16x64xf32, #tpu.memory_space<vmem>>, vector<2x32xf32>,
    %90 = arith.index_cast %35 : i32 to index
    %c0_49 = arith.constant 0 : index
    %91 = vector.load %arg9[%90, %c0_49] : memref<16x32xf32, #tpu.memory_space<vmem>>, vector<2x32xf32>
    tpu.vector_store %arg9[%90, %c0_49], %87 {strides = array<i32>} : memref<16x32xf32, #tpu.memory_space<vmem>>, vector<2x32xf32>,
    %c1_i32 = arith.constant 1 : i32
    %c2_i32_50 = arith.constant 2 : i32
    %92 = arith.muli %c1_i32, %c2_i32_50 : i32
    %c7_i32_51 = arith.constant 7 : i32
    %93 = arith.subi %c7_i32_51, %c1_i32 : i32
    %c2_i32_52 = arith.constant 2 : i32
    %94 = arith.muli %93, %c2_i32_52 : i32
    %c0_53 = arith.constant 0 : index
    %95 = arith.index_cast %92 : i32 to index
    %c0_54 = arith.constant 0 : index
    %96 = vector.load %arg8[%c0_53, %95, %c0_54] : memref<2x16x96xf32, #tpu.memory_space<vmem>>, vector<1x2x96xf32>
    %97 = vector.shape_cast %96 : vector<1x2x96xf32> to vector<2x96xf32>
    %cst_55 = arith.constant dense<0.000000e+00> : vector<2x96xf32>
    %98 = tpu.matmul %61, %22, %cst_55 {dimension_numbers = #tpu.dot_dimension_numbers<[1], [0], [0], [1], [0, 0, 1, 1], [], []>} : vector<2x32xf32>, vector<32x96xf32>, vector<2x96xf32> -> vector<2x96xf32>
    %99 = vector.broadcast %26 : vector<1x96xf32> to vector<2x96xf32>
    %100 = arith.addf %98, %99 : vector<2x96xf32>
    %101 = vector.extract_strided_slice %97 {offsets = [0, 0], sizes = [2, 64], strides = [1, 1]} : vector<2x96xf32> to vector<2x64xf32>
    %102 = vector.extract_strided_slice %100 {offsets = [0, 0], sizes = [2, 64], strides = [1, 1]} : vector<2x96xf32> to vector<2x64xf32>
    %103 = arith.addf %101, %102 : vector<2x64xf32>
    %104 = arith.negf %103 : vector<2x64xf32>
    %105 = math.exp %104 : vector<2x64xf32>
    %cst_56 = arith.constant 1.000000e+00 : f32
    %106 = vector.broadcast %cst_56 : f32 to vector<2x64xf32>
    %107 = arith.addf %106, %105 : vector<2x64xf32>
    %108 = arith.divf %106, %107 : vector<2x64xf32>
    %109 = vector.extract_strided_slice %108 {offsets = [0, 0], sizes = [2, 32], strides = [1, 1]} : vector<2x64xf32> to vector<2x32xf32>
    %110 = vector.extract_strided_slice %108 {offsets = [0, 32], sizes = [2, 32], strides = [1, 1]} : vector<2x64xf32> to vector<2x32xf32>
    %111 = vector.extract_strided_slice %97 {offsets = [0, 64], sizes = [2, 32], strides = [1, 1]} : vector<2x96xf32> to vector<2x32xf32>
    %112 = vector.extract_strided_slice %100 {offsets = [0, 64], sizes = [2, 32], strides = [1, 1]} : vector<2x96xf32> to vector<2x32xf32>
    %113 = arith.mulf %109, %112 : vector<2x32xf32>
    %114 = arith.addf %111, %113 : vector<2x32xf32>
    %115 = math.tanh %114 : vector<2x32xf32>
    %cst_57 = arith.constant 1.000000e+00 : f32
    %116 = vector.broadcast %cst_57 : f32 to vector<2x32xf32>
    %117 = arith.subf %116, %110 : vector<2x32xf32>
    %118 = arith.mulf %117, %115 : vector<2x32xf32>
    %119 = arith.mulf %110, %61 : vector<2x32xf32>
    %120 = arith.addf %118, %119 : vector<2x32xf32>
    %c1_58 = arith.constant 1 : index
    %121 = arith.index_cast %94 : i32 to index
    %c0_59 = arith.constant 0 : index
    %122 = vector.load %arg8[%c1_58, %121, %c0_59] : memref<2x16x96xf32, #tpu.memory_space<vmem>>, vector<1x2x96xf32>
    %123 = vector.shape_cast %122 : vector<1x2x96xf32> to vector<2x96xf32>
    %cst_60 = arith.constant dense<0.000000e+00> : vector<2x96xf32>
    %124 = tpu.matmul %87, %24, %cst_60 {dimension_numbers = #tpu.dot_dimension_numbers<[1], [0], [0], [1], [0, 0, 1, 1], [], []>} : vector<2x32xf32>, vector<32x96xf32>, vector<2x96xf32> -> vector<2x96xf32>
    %125 = vector.broadcast %28 : vector<1x96xf32> to vector<2x96xf32>
    %126 = arith.addf %124, %125 : vector<2x96xf32>
    %127 = vector.extract_strided_slice %123 {offsets = [0, 0], sizes = [2, 64], strides = [1, 1]} : vector<2x96xf32> to vector<2x64xf32>
    %128 = vector.extract_strided_slice %126 {offsets = [0, 0], sizes = [2, 64], strides = [1, 1]} : vector<2x96xf32> to vector<2x64xf32>
    %129 = arith.addf %127, %128 : vector<2x64xf32>
    %130 = arith.negf %129 : vector<2x64xf32>
    %131 = math.exp %130 : vector<2x64xf32>
    %cst_61 = arith.constant 1.000000e+00 : f32
    %132 = vector.broadcast %cst_61 : f32 to vector<2x64xf32>
    %133 = arith.addf %132, %131 : vector<2x64xf32>
    %134 = arith.divf %132, %133 : vector<2x64xf32>
    %135 = vector.extract_strided_slice %134 {offsets = [0, 0], sizes = [2, 32], strides = [1, 1]} : vector<2x64xf32> to vector<2x32xf32>
    %136 = vector.extract_strided_slice %134 {offsets = [0, 32], sizes = [2, 32], strides = [1, 1]} : vector<2x64xf32> to vector<2x32xf32>
    %137 = vector.extract_strided_slice %123 {offsets = [0, 64], sizes = [2, 32], strides = [1, 1]} : vector<2x96xf32> to vector<2x32xf32>
    %138 = vector.extract_strided_slice %126 {offsets = [0, 64], sizes = [2, 32], strides = [1, 1]} : vector<2x96xf32> to vector<2x32xf32>
    %139 = arith.mulf %135, %138 : vector<2x32xf32>
    %140 = arith.addf %137, %139 : vector<2x32xf32>
    %141 = math.tanh %140 : vector<2x32xf32>
    %cst_62 = arith.constant 1.000000e+00 : f32
    %142 = vector.broadcast %cst_62 : f32 to vector<2x32xf32>
    %143 = arith.subf %142, %136 : vector<2x32xf32>
    %144 = arith.mulf %143, %141 : vector<2x32xf32>
    %145 = arith.mulf %136, %87 : vector<2x32xf32>
    %146 = arith.addf %144, %145 : vector<2x32xf32>
    %147 = arith.index_cast %92 : i32 to index
    %c0_63 = arith.constant 0 : index
    %148 = vector.load %arg6[%147, %c0_63] : memref<16x64xf32, #tpu.memory_space<vmem>>, vector<2x32xf32>
    tpu.vector_store %arg6[%147, %c0_63], %120 {strides = array<i32>} : memref<16x64xf32, #tpu.memory_space<vmem>>, vector<2x32xf32>,
    %149 = arith.index_cast %94 : i32 to index
    %c0_64 = arith.constant 0 : index
    %150 = vector.load %arg9[%149, %c0_64] : memref<16x32xf32, #tpu.memory_space<vmem>>, vector<2x32xf32>
    tpu.vector_store %arg9[%149, %c0_64], %146 {strides = array<i32>} : memref<16x32xf32, #tpu.memory_space<vmem>>, vector<2x32xf32>,
    %c2_i32_65 = arith.constant 2 : i32
    %c2_i32_66 = arith.constant 2 : i32
    %151 = arith.muli %c2_i32_65, %c2_i32_66 : i32
    %c7_i32_67 = arith.constant 7 : i32
    %152 = arith.subi %c7_i32_67, %c2_i32_65 : i32
    %c2_i32_68 = arith.constant 2 : i32
    %153 = arith.muli %152, %c2_i32_68 : i32
    %c0_69 = arith.constant 0 : index
    %154 = arith.index_cast %151 : i32 to index
    %c0_70 = arith.constant 0 : index
    %155 = vector.load %arg8[%c0_69, %154, %c0_70] : memref<2x16x96xf32, #tpu.memory_space<vmem>>, vector<1x2x96xf32>
    %156 = vector.shape_cast %155 : vector<1x2x96xf32> to vector<2x96xf32>
    %cst_71 = arith.constant dense<0.000000e+00> : vector<2x96xf32>
    %157 = tpu.matmul %120, %22, %cst_71 {dimension_numbers = #tpu.dot_dimension_numbers<[1], [0], [0], [1], [0, 0, 1, 1], [], []>} : vector<2x32xf32>, vector<32x96xf32>, vector<2x96xf32> -> vector<2x96xf32>
    %158 = vector.broadcast %26 : vector<1x96xf32> to vector<2x96xf32>
    %159 = arith.addf %157, %158 : vector<2x96xf32>
    %160 = vector.extract_strided_slice %156 {offsets = [0, 0], sizes = [2, 64], strides = [1, 1]} : vector<2x96xf32> to vector<2x64xf32>
    %161 = vector.extract_strided_slice %159 {offsets = [0, 0], sizes = [2, 64], strides = [1, 1]} : vector<2x96xf32> to vector<2x64xf32>
    %162 = arith.addf %160, %161 : vector<2x64xf32>
    %163 = arith.negf %162 : vector<2x64xf32>
    %164 = math.exp %163 : vector<2x64xf32>
    %cst_72 = arith.constant 1.000000e+00 : f32
    %165 = vector.broadcast %cst_72 : f32 to vector<2x64xf32>
    %166 = arith.addf %165, %164 : vector<2x64xf32>
    %167 = arith.divf %165, %166 : vector<2x64xf32>
    %168 = vector.extract_strided_slice %167 {offsets = [0, 0], sizes = [2, 32], strides = [1, 1]} : vector<2x64xf32> to vector<2x32xf32>
    %169 = vector.extract_strided_slice %167 {offsets = [0, 32], sizes = [2, 32], strides = [1, 1]} : vector<2x64xf32> to vector<2x32xf32>
    %170 = vector.extract_strided_slice %156 {offsets = [0, 64], sizes = [2, 32], strides = [1, 1]} : vector<2x96xf32> to vector<2x32xf32>
    %171 = vector.extract_strided_slice %159 {offsets = [0, 64], sizes = [2, 32], strides = [1, 1]} : vector<2x96xf32> to vector<2x32xf32>
    %172 = arith.mulf %168, %171 : vector<2x32xf32>
    %173 = arith.addf %170, %172 : vector<2x32xf32>
    %174 = math.tanh %173 : vector<2x32xf32>
    %cst_73 = arith.constant 1.000000e+00 : f32
    %175 = vector.broadcast %cst_73 : f32 to vector<2x32xf32>
    %176 = arith.subf %175, %169 : vector<2x32xf32>
    %177 = arith.mulf %176, %174 : vector<2x32xf32>
    %178 = arith.mulf %169, %120 : vector<2x32xf32>
    %179 = arith.addf %177, %178 : vector<2x32xf32>
    %c1_74 = arith.constant 1 : index
    %180 = arith.index_cast %153 : i32 to index
    %c0_75 = arith.constant 0 : index
    %181 = vector.load %arg8[%c1_74, %180, %c0_75] : memref<2x16x96xf32, #tpu.memory_space<vmem>>, vector<1x2x96xf32>
    %182 = vector.shape_cast %181 : vector<1x2x96xf32> to vector<2x96xf32>
    %cst_76 = arith.constant dense<0.000000e+00> : vector<2x96xf32>
    %183 = tpu.matmul %146, %24, %cst_76 {dimension_numbers = #tpu.dot_dimension_numbers<[1], [0], [0], [1], [0, 0, 1, 1], [], []>} : vector<2x32xf32>, vector<32x96xf32>, vector<2x96xf32> -> vector<2x96xf32>
    %184 = vector.broadcast %28 : vector<1x96xf32> to vector<2x96xf32>
    %185 = arith.addf %183, %184 : vector<2x96xf32>
    %186 = vector.extract_strided_slice %182 {offsets = [0, 0], sizes = [2, 64], strides = [1, 1]} : vector<2x96xf32> to vector<2x64xf32>
    %187 = vector.extract_strided_slice %185 {offsets = [0, 0], sizes = [2, 64], strides = [1, 1]} : vector<2x96xf32> to vector<2x64xf32>
    %188 = arith.addf %186, %187 : vector<2x64xf32>
    %189 = arith.negf %188 : vector<2x64xf32>
    %190 = math.exp %189 : vector<2x64xf32>
    %cst_77 = arith.constant 1.000000e+00 : f32
    %191 = vector.broadcast %cst_77 : f32 to vector<2x64xf32>
    %192 = arith.addf %191, %190 : vector<2x64xf32>
    %193 = arith.divf %191, %192 : vector<2x64xf32>
    %194 = vector.extract_strided_slice %193 {offsets = [0, 0], sizes = [2, 32], strides = [1, 1]} : vector<2x64xf32> to vector<2x32xf32>
    %195 = vector.extract_strided_slice %193 {offsets = [0, 32], sizes = [2, 32], strides = [1, 1]} : vector<2x64xf32> to vector<2x32xf32>
    %196 = vector.extract_strided_slice %182 {offsets = [0, 64], sizes = [2, 32], strides = [1, 1]} : vector<2x96xf32> to vector<2x32xf32>
    %197 = vector.extract_strided_slice %185 {offsets = [0, 64], sizes = [2, 32], strides = [1, 1]} : vector<2x96xf32> to vector<2x32xf32>
    %198 = arith.mulf %194, %197 : vector<2x32xf32>
    %199 = arith.addf %196, %198 : vector<2x32xf32>
    %200 = math.tanh %199 : vector<2x32xf32>
    %cst_78 = arith.constant 1.000000e+00 : f32
    %201 = vector.broadcast %cst_78 : f32 to vector<2x32xf32>
    %202 = arith.subf %201, %195 : vector<2x32xf32>
    %203 = arith.mulf %202, %200 : vector<2x32xf32>
    %204 = arith.mulf %195, %146 : vector<2x32xf32>
    %205 = arith.addf %203, %204 : vector<2x32xf32>
    %206 = arith.index_cast %151 : i32 to index
    %c0_79 = arith.constant 0 : index
    %207 = vector.load %arg6[%206, %c0_79] : memref<16x64xf32, #tpu.memory_space<vmem>>, vector<2x32xf32>
    tpu.vector_store %arg6[%206, %c0_79], %179 {strides = array<i32>} : memref<16x64xf32, #tpu.memory_space<vmem>>, vector<2x32xf32>,
    %208 = arith.index_cast %153 : i32 to index
    %c0_80 = arith.constant 0 : index
    %209 = vector.load %arg9[%208, %c0_80] : memref<16x32xf32, #tpu.memory_space<vmem>>, vector<2x32xf32>
    tpu.vector_store %arg9[%208, %c0_80], %205 {strides = array<i32>} : memref<16x32xf32, #tpu.memory_space<vmem>>, vector<2x32xf32>,
    %c3_i32 = arith.constant 3 : i32
    %c2_i32_81 = arith.constant 2 : i32
    %210 = arith.muli %c3_i32, %c2_i32_81 : i32
    %c7_i32_82 = arith.constant 7 : i32
    %211 = arith.subi %c7_i32_82, %c3_i32 : i32
    %c2_i32_83 = arith.constant 2 : i32
    %212 = arith.muli %211, %c2_i32_83 : i32
    %c0_84 = arith.constant 0 : index
    %213 = arith.index_cast %210 : i32 to index
    %c0_85 = arith.constant 0 : index
    %214 = vector.load %arg8[%c0_84, %213, %c0_85] : memref<2x16x96xf32, #tpu.memory_space<vmem>>, vector<1x2x96xf32>
    %215 = vector.shape_cast %214 : vector<1x2x96xf32> to vector<2x96xf32>
    %cst_86 = arith.constant dense<0.000000e+00> : vector<2x96xf32>
    %216 = tpu.matmul %179, %22, %cst_86 {dimension_numbers = #tpu.dot_dimension_numbers<[1], [0], [0], [1], [0, 0, 1, 1], [], []>} : vector<2x32xf32>, vector<32x96xf32>, vector<2x96xf32> -> vector<2x96xf32>
    %217 = vector.broadcast %26 : vector<1x96xf32> to vector<2x96xf32>
    %218 = arith.addf %216, %217 : vector<2x96xf32>
    %219 = vector.extract_strided_slice %215 {offsets = [0, 0], sizes = [2, 64], strides = [1, 1]} : vector<2x96xf32> to vector<2x64xf32>
    %220 = vector.extract_strided_slice %218 {offsets = [0, 0], sizes = [2, 64], strides = [1, 1]} : vector<2x96xf32> to vector<2x64xf32>
    %221 = arith.addf %219, %220 : vector<2x64xf32>
    %222 = arith.negf %221 : vector<2x64xf32>
    %223 = math.exp %222 : vector<2x64xf32>
    %cst_87 = arith.constant 1.000000e+00 : f32
    %224 = vector.broadcast %cst_87 : f32 to vector<2x64xf32>
    %225 = arith.addf %224, %223 : vector<2x64xf32>
    %226 = arith.divf %224, %225 : vector<2x64xf32>
    %227 = vector.extract_strided_slice %226 {offsets = [0, 0], sizes = [2, 32], strides = [1, 1]} : vector<2x64xf32> to vector<2x32xf32>
    %228 = vector.extract_strided_slice %226 {offsets = [0, 32], sizes = [2, 32], strides = [1, 1]} : vector<2x64xf32> to vector<2x32xf32>
    %229 = vector.extract_strided_slice %215 {offsets = [0, 64], sizes = [2, 32], strides = [1, 1]} : vector<2x96xf32> to vector<2x32xf32>
    %230 = vector.extract_strided_slice %218 {offsets = [0, 64], sizes = [2, 32], strides = [1, 1]} : vector<2x96xf32> to vector<2x32xf32>
    %231 = arith.mulf %227, %230 : vector<2x32xf32>
    %232 = arith.addf %229, %231 : vector<2x32xf32>
    %233 = math.tanh %232 : vector<2x32xf32>
    %cst_88 = arith.constant 1.000000e+00 : f32
    %234 = vector.broadcast %cst_88 : f32 to vector<2x32xf32>
    %235 = arith.subf %234, %228 : vector<2x32xf32>
    %236 = arith.mulf %235, %233 : vector<2x32xf32>
    %237 = arith.mulf %228, %179 : vector<2x32xf32>
    %238 = arith.addf %236, %237 : vector<2x32xf32>
    %c1_89 = arith.constant 1 : index
    %239 = arith.index_cast %212 : i32 to index
    %c0_90 = arith.constant 0 : index
    %240 = vector.load %arg8[%c1_89, %239, %c0_90] : memref<2x16x96xf32, #tpu.memory_space<vmem>>, vector<1x2x96xf32>
    %241 = vector.shape_cast %240 : vector<1x2x96xf32> to vector<2x96xf32>
    %cst_91 = arith.constant dense<0.000000e+00> : vector<2x96xf32>
    %242 = tpu.matmul %205, %24, %cst_91 {dimension_numbers = #tpu.dot_dimension_numbers<[1], [0], [0], [1], [0, 0, 1, 1], [], []>} : vector<2x32xf32>, vector<32x96xf32>, vector<2x96xf32> -> vector<2x96xf32>
    %243 = vector.broadcast %28 : vector<1x96xf32> to vector<2x96xf32>
    %244 = arith.addf %242, %243 : vector<2x96xf32>
    %245 = vector.extract_strided_slice %241 {offsets = [0, 0], sizes = [2, 64], strides = [1, 1]} : vector<2x96xf32> to vector<2x64xf32>
    %246 = vector.extract_strided_slice %244 {offsets = [0, 0], sizes = [2, 64], strides = [1, 1]} : vector<2x96xf32> to vector<2x64xf32>
    %247 = arith.addf %245, %246 : vector<2x64xf32>
    %248 = arith.negf %247 : vector<2x64xf32>
    %249 = math.exp %248 : vector<2x64xf32>
    %cst_92 = arith.constant 1.000000e+00 : f32
    %250 = vector.broadcast %cst_92 : f32 to vector<2x64xf32>
    %251 = arith.addf %250, %249 : vector<2x64xf32>
    %252 = arith.divf %250, %251 : vector<2x64xf32>
    %253 = vector.extract_strided_slice %252 {offsets = [0, 0], sizes = [2, 32], strides = [1, 1]} : vector<2x64xf32> to vector<2x32xf32>
    %254 = vector.extract_strided_slice %252 {offsets = [0, 32], sizes = [2, 32], strides = [1, 1]} : vector<2x64xf32> to vector<2x32xf32>
    %255 = vector.extract_strided_slice %241 {offsets = [0, 64], sizes = [2, 32], strides = [1, 1]} : vector<2x96xf32> to vector<2x32xf32>
    %256 = vector.extract_strided_slice %244 {offsets = [0, 64], sizes = [2, 32], strides = [1, 1]} : vector<2x96xf32> to vector<2x32xf32>
    %257 = arith.mulf %253, %256 : vector<2x32xf32>
    %258 = arith.addf %255, %257 : vector<2x32xf32>
    %259 = math.tanh %258 : vector<2x32xf32>
    %cst_93 = arith.constant 1.000000e+00 : f32
    %260 = vector.broadcast %cst_93 : f32 to vector<2x32xf32>
    %261 = arith.subf %260, %254 : vector<2x32xf32>
    %262 = arith.mulf %261, %259 : vector<2x32xf32>
    %263 = arith.mulf %254, %205 : vector<2x32xf32>
    %264 = arith.addf %262, %263 : vector<2x32xf32>
    %265 = arith.index_cast %210 : i32 to index
    %c0_94 = arith.constant 0 : index
    %266 = vector.load %arg6[%265, %c0_94] : memref<16x64xf32, #tpu.memory_space<vmem>>, vector<2x32xf32>
    tpu.vector_store %arg6[%265, %c0_94], %238 {strides = array<i32>} : memref<16x64xf32, #tpu.memory_space<vmem>>, vector<2x32xf32>,
    %267 = arith.index_cast %212 : i32 to index
    %c0_95 = arith.constant 0 : index
    %268 = vector.load %arg9[%267, %c0_95] : memref<16x32xf32, #tpu.memory_space<vmem>>, vector<2x32xf32>
    tpu.vector_store %arg9[%267, %c0_95], %264 {strides = array<i32>} : memref<16x32xf32, #tpu.memory_space<vmem>>, vector<2x32xf32>,
    %c4_i32 = arith.constant 4 : i32
    %c2_i32_96 = arith.constant 2 : i32
    %269 = arith.muli %c4_i32, %c2_i32_96 : i32
    %c7_i32_97 = arith.constant 7 : i32
    %270 = arith.subi %c7_i32_97, %c4_i32 : i32
    %c2_i32_98 = arith.constant 2 : i32
    %271 = arith.muli %270, %c2_i32_98 : i32
    %c0_99 = arith.constant 0 : index
    %272 = arith.index_cast %269 : i32 to index
    %c0_100 = arith.constant 0 : index
    %273 = vector.load %arg8[%c0_99, %272, %c0_100] : memref<2x16x96xf32, #tpu.memory_space<vmem>>, vector<1x2x96xf32>
    %274 = vector.shape_cast %273 : vector<1x2x96xf32> to vector<2x96xf32>
    %cst_101 = arith.constant dense<0.000000e+00> : vector<2x96xf32>
    %275 = tpu.matmul %238, %22, %cst_101 {dimension_numbers = #tpu.dot_dimension_numbers<[1], [0], [0], [1], [0, 0, 1, 1], [], []>} : vector<2x32xf32>, vector<32x96xf32>, vector<2x96xf32> -> vector<2x96xf32>
    %276 = vector.broadcast %26 : vector<1x96xf32> to vector<2x96xf32>
    %277 = arith.addf %275, %276 : vector<2x96xf32>
    %278 = vector.extract_strided_slice %274 {offsets = [0, 0], sizes = [2, 64], strides = [1, 1]} : vector<2x96xf32> to vector<2x64xf32>
    %279 = vector.extract_strided_slice %277 {offsets = [0, 0], sizes = [2, 64], strides = [1, 1]} : vector<2x96xf32> to vector<2x64xf32>
    %280 = arith.addf %278, %279 : vector<2x64xf32>
    %281 = arith.negf %280 : vector<2x64xf32>
    %282 = math.exp %281 : vector<2x64xf32>
    %cst_102 = arith.constant 1.000000e+00 : f32
    %283 = vector.broadcast %cst_102 : f32 to vector<2x64xf32>
    %284 = arith.addf %283, %282 : vector<2x64xf32>
    %285 = arith.divf %283, %284 : vector<2x64xf32>
    %286 = vector.extract_strided_slice %285 {offsets = [0, 0], sizes = [2, 32], strides = [1, 1]} : vector<2x64xf32> to vector<2x32xf32>
    %287 = vector.extract_strided_slice %285 {offsets = [0, 32], sizes = [2, 32], strides = [1, 1]} : vector<2x64xf32> to vector<2x32xf32>
    %288 = vector.extract_strided_slice %274 {offsets = [0, 64], sizes = [2, 32], strides = [1, 1]} : vector<2x96xf32> to vector<2x32xf32>
    %289 = vector.extract_strided_slice %277 {offsets = [0, 64], sizes = [2, 32], strides = [1, 1]} : vector<2x96xf32> to vector<2x32xf32>
    %290 = arith.mulf %286, %289 : vector<2x32xf32>
    %291 = arith.addf %288, %290 : vector<2x32xf32>
    %292 = math.tanh %291 : vector<2x32xf32>
    %cst_103 = arith.constant 1.000000e+00 : f32
    %293 = vector.broadcast %cst_103 : f32 to vector<2x32xf32>
    %294 = arith.subf %293, %287 : vector<2x32xf32>
    %295 = arith.mulf %294, %292 : vector<2x32xf32>
    %296 = arith.mulf %287, %238 : vector<2x32xf32>
    %297 = arith.addf %295, %296 : vector<2x32xf32>
    %c1_104 = arith.constant 1 : index
    %298 = arith.index_cast %271 : i32 to index
    %c0_105 = arith.constant 0 : index
    %299 = vector.load %arg8[%c1_104, %298, %c0_105] : memref<2x16x96xf32, #tpu.memory_space<vmem>>, vector<1x2x96xf32>
    %300 = vector.shape_cast %299 : vector<1x2x96xf32> to vector<2x96xf32>
    %cst_106 = arith.constant dense<0.000000e+00> : vector<2x96xf32>
    %301 = tpu.matmul %264, %24, %cst_106 {dimension_numbers = #tpu.dot_dimension_numbers<[1], [0], [0], [1], [0, 0, 1, 1], [], []>} : vector<2x32xf32>, vector<32x96xf32>, vector<2x96xf32> -> vector<2x96xf32>
    %302 = vector.broadcast %28 : vector<1x96xf32> to vector<2x96xf32>
    %303 = arith.addf %301, %302 : vector<2x96xf32>
    %304 = vector.extract_strided_slice %300 {offsets = [0, 0], sizes = [2, 64], strides = [1, 1]} : vector<2x96xf32> to vector<2x64xf32>
    %305 = vector.extract_strided_slice %303 {offsets = [0, 0], sizes = [2, 64], strides = [1, 1]} : vector<2x96xf32> to vector<2x64xf32>
    %306 = arith.addf %304, %305 : vector<2x64xf32>
    %307 = arith.negf %306 : vector<2x64xf32>
    %308 = math.exp %307 : vector<2x64xf32>
    %cst_107 = arith.constant 1.000000e+00 : f32
    %309 = vector.broadcast %cst_107 : f32 to vector<2x64xf32>
    %310 = arith.addf %309, %308 : vector<2x64xf32>
    %311 = arith.divf %309, %310 : vector<2x64xf32>
    %312 = vector.extract_strided_slice %311 {offsets = [0, 0], sizes = [2, 32], strides = [1, 1]} : vector<2x64xf32> to vector<2x32xf32>
    %313 = vector.extract_strided_slice %311 {offsets = [0, 32], sizes = [2, 32], strides = [1, 1]} : vector<2x64xf32> to vector<2x32xf32>
    %314 = vector.extract_strided_slice %300 {offsets = [0, 64], sizes = [2, 32], strides = [1, 1]} : vector<2x96xf32> to vector<2x32xf32>
    %315 = vector.extract_strided_slice %303 {offsets = [0, 64], sizes = [2, 32], strides = [1, 1]} : vector<2x96xf32> to vector<2x32xf32>
    %316 = arith.mulf %312, %315 : vector<2x32xf32>
    %317 = arith.addf %314, %316 : vector<2x32xf32>
    %318 = math.tanh %317 : vector<2x32xf32>
    %cst_108 = arith.constant 1.000000e+00 : f32
    %319 = vector.broadcast %cst_108 : f32 to vector<2x32xf32>
    %320 = arith.subf %319, %313 : vector<2x32xf32>
    %321 = arith.mulf %320, %318 : vector<2x32xf32>
    %322 = arith.mulf %313, %264 : vector<2x32xf32>
    %323 = arith.addf %321, %322 : vector<2x32xf32>
    %324 = arith.index_cast %269 : i32 to index
    %c0_109 = arith.constant 0 : index
    %325 = vector.load %arg6[%324, %c0_109] : memref<16x64xf32, #tpu.memory_space<vmem>>, vector<2x32xf32>
    tpu.vector_store %arg6[%324, %c0_109], %297 {strides = array<i32>} : memref<16x64xf32, #tpu.memory_space<vmem>>, vector<2x32xf32>,
    %326 = arith.index_cast %271 : i32 to index
    %c0_110 = arith.constant 0 : index
    %327 = vector.load %arg9[%326, %c0_110] : memref<16x32xf32, #tpu.memory_space<vmem>>, vector<2x32xf32>
    tpu.vector_store %arg9[%326, %c0_110], %323 {strides = array<i32>} : memref<16x32xf32, #tpu.memory_space<vmem>>, vector<2x32xf32>,
    %c5_i32 = arith.constant 5 : i32
    %c2_i32_111 = arith.constant 2 : i32
    %328 = arith.muli %c5_i32, %c2_i32_111 : i32
    %c7_i32_112 = arith.constant 7 : i32
    %329 = arith.subi %c7_i32_112, %c5_i32 : i32
    %c2_i32_113 = arith.constant 2 : i32
    %330 = arith.muli %329, %c2_i32_113 : i32
    %c0_114 = arith.constant 0 : index
    %331 = arith.index_cast %328 : i32 to index
    %c0_115 = arith.constant 0 : index
    %332 = vector.load %arg8[%c0_114, %331, %c0_115] : memref<2x16x96xf32, #tpu.memory_space<vmem>>, vector<1x2x96xf32>
    %333 = vector.shape_cast %332 : vector<1x2x96xf32> to vector<2x96xf32>
    %cst_116 = arith.constant dense<0.000000e+00> : vector<2x96xf32>
    %334 = tpu.matmul %297, %22, %cst_116 {dimension_numbers = #tpu.dot_dimension_numbers<[1], [0], [0], [1], [0, 0, 1, 1], [], []>} : vector<2x32xf32>, vector<32x96xf32>, vector<2x96xf32> -> vector<2x96xf32>
    %335 = vector.broadcast %26 : vector<1x96xf32> to vector<2x96xf32>
    %336 = arith.addf %334, %335 : vector<2x96xf32>
    %337 = vector.extract_strided_slice %333 {offsets = [0, 0], sizes = [2, 64], strides = [1, 1]} : vector<2x96xf32> to vector<2x64xf32>
    %338 = vector.extract_strided_slice %336 {offsets = [0, 0], sizes = [2, 64], strides = [1, 1]} : vector<2x96xf32> to vector<2x64xf32>
    %339 = arith.addf %337, %338 : vector<2x64xf32>
    %340 = arith.negf %339 : vector<2x64xf32>
    %341 = math.exp %340 : vector<2x64xf32>
    %cst_117 = arith.constant 1.000000e+00 : f32
    %342 = vector.broadcast %cst_117 : f32 to vector<2x64xf32>
    %343 = arith.addf %342, %341 : vector<2x64xf32>
    %344 = arith.divf %342, %343 : vector<2x64xf32>
    %345 = vector.extract_strided_slice %344 {offsets = [0, 0], sizes = [2, 32], strides = [1, 1]} : vector<2x64xf32> to vector<2x32xf32>
    %346 = vector.extract_strided_slice %344 {offsets = [0, 32], sizes = [2, 32], strides = [1, 1]} : vector<2x64xf32> to vector<2x32xf32>
    %347 = vector.extract_strided_slice %333 {offsets = [0, 64], sizes = [2, 32], strides = [1, 1]} : vector<2x96xf32> to vector<2x32xf32>
    %348 = vector.extract_strided_slice %336 {offsets = [0, 64], sizes = [2, 32], strides = [1, 1]} : vector<2x96xf32> to vector<2x32xf32>
    %349 = arith.mulf %345, %348 : vector<2x32xf32>
    %350 = arith.addf %347, %349 : vector<2x32xf32>
    %351 = math.tanh %350 : vector<2x32xf32>
    %cst_118 = arith.constant 1.000000e+00 : f32
    %352 = vector.broadcast %cst_118 : f32 to vector<2x32xf32>
    %353 = arith.subf %352, %346 : vector<2x32xf32>
    %354 = arith.mulf %353, %351 : vector<2x32xf32>
    %355 = arith.mulf %346, %297 : vector<2x32xf32>
    %356 = arith.addf %354, %355 : vector<2x32xf32>
    %c1_119 = arith.constant 1 : index
    %357 = arith.index_cast %330 : i32 to index
    %c0_120 = arith.constant 0 : index
    %358 = vector.load %arg8[%c1_119, %357, %c0_120] : memref<2x16x96xf32, #tpu.memory_space<vmem>>, vector<1x2x96xf32>
    %359 = vector.shape_cast %358 : vector<1x2x96xf32> to vector<2x96xf32>
    %cst_121 = arith.constant dense<0.000000e+00> : vector<2x96xf32>
    %360 = tpu.matmul %323, %24, %cst_121 {dimension_numbers = #tpu.dot_dimension_numbers<[1], [0], [0], [1], [0, 0, 1, 1], [], []>} : vector<2x32xf32>, vector<32x96xf32>, vector<2x96xf32> -> vector<2x96xf32>
    %361 = vector.broadcast %28 : vector<1x96xf32> to vector<2x96xf32>
    %362 = arith.addf %360, %361 : vector<2x96xf32>
    %363 = vector.extract_strided_slice %359 {offsets = [0, 0], sizes = [2, 64], strides = [1, 1]} : vector<2x96xf32> to vector<2x64xf32>
    %364 = vector.extract_strided_slice %362 {offsets = [0, 0], sizes = [2, 64], strides = [1, 1]} : vector<2x96xf32> to vector<2x64xf32>
    %365 = arith.addf %363, %364 : vector<2x64xf32>
    %366 = arith.negf %365 : vector<2x64xf32>
    %367 = math.exp %366 : vector<2x64xf32>
    %cst_122 = arith.constant 1.000000e+00 : f32
    %368 = vector.broadcast %cst_122 : f32 to vector<2x64xf32>
    %369 = arith.addf %368, %367 : vector<2x64xf32>
    %370 = arith.divf %368, %369 : vector<2x64xf32>
    %371 = vector.extract_strided_slice %370 {offsets = [0, 0], sizes = [2, 32], strides = [1, 1]} : vector<2x64xf32> to vector<2x32xf32>
    %372 = vector.extract_strided_slice %370 {offsets = [0, 32], sizes = [2, 32], strides = [1, 1]} : vector<2x64xf32> to vector<2x32xf32>
    %373 = vector.extract_strided_slice %359 {offsets = [0, 64], sizes = [2, 32], strides = [1, 1]} : vector<2x96xf32> to vector<2x32xf32>
    %374 = vector.extract_strided_slice %362 {offsets = [0, 64], sizes = [2, 32], strides = [1, 1]} : vector<2x96xf32> to vector<2x32xf32>
    %375 = arith.mulf %371, %374 : vector<2x32xf32>
    %376 = arith.addf %373, %375 : vector<2x32xf32>
    %377 = math.tanh %376 : vector<2x32xf32>
    %cst_123 = arith.constant 1.000000e+00 : f32
    %378 = vector.broadcast %cst_123 : f32 to vector<2x32xf32>
    %379 = arith.subf %378, %372 : vector<2x32xf32>
    %380 = arith.mulf %379, %377 : vector<2x32xf32>
    %381 = arith.mulf %372, %323 : vector<2x32xf32>
    %382 = arith.addf %380, %381 : vector<2x32xf32>
    %383 = arith.index_cast %328 : i32 to index
    %c0_124 = arith.constant 0 : index
    %384 = vector.load %arg6[%383, %c0_124] : memref<16x64xf32, #tpu.memory_space<vmem>>, vector<2x32xf32>
    tpu.vector_store %arg6[%383, %c0_124], %356 {strides = array<i32>} : memref<16x64xf32, #tpu.memory_space<vmem>>, vector<2x32xf32>,
    %385 = arith.index_cast %330 : i32 to index
    %c0_125 = arith.constant 0 : index
    %386 = vector.load %arg9[%385, %c0_125] : memref<16x32xf32, #tpu.memory_space<vmem>>, vector<2x32xf32>
    tpu.vector_store %arg9[%385, %c0_125], %382 {strides = array<i32>} : memref<16x32xf32, #tpu.memory_space<vmem>>, vector<2x32xf32>,
    %c6_i32 = arith.constant 6 : i32
    %c2_i32_126 = arith.constant 2 : i32
    %387 = arith.muli %c6_i32, %c2_i32_126 : i32
    %c7_i32_127 = arith.constant 7 : i32
    %388 = arith.subi %c7_i32_127, %c6_i32 : i32
    %c2_i32_128 = arith.constant 2 : i32
    %389 = arith.muli %388, %c2_i32_128 : i32
    %c0_129 = arith.constant 0 : index
    %390 = arith.index_cast %387 : i32 to index
    %c0_130 = arith.constant 0 : index
    %391 = vector.load %arg8[%c0_129, %390, %c0_130] : memref<2x16x96xf32, #tpu.memory_space<vmem>>, vector<1x2x96xf32>
    %392 = vector.shape_cast %391 : vector<1x2x96xf32> to vector<2x96xf32>
    %cst_131 = arith.constant dense<0.000000e+00> : vector<2x96xf32>
    %393 = tpu.matmul %356, %22, %cst_131 {dimension_numbers = #tpu.dot_dimension_numbers<[1], [0], [0], [1], [0, 0, 1, 1], [], []>} : vector<2x32xf32>, vector<32x96xf32>, vector<2x96xf32> -> vector<2x96xf32>
    %394 = vector.broadcast %26 : vector<1x96xf32> to vector<2x96xf32>
    %395 = arith.addf %393, %394 : vector<2x96xf32>
    %396 = vector.extract_strided_slice %392 {offsets = [0, 0], sizes = [2, 64], strides = [1, 1]} : vector<2x96xf32> to vector<2x64xf32>
    %397 = vector.extract_strided_slice %395 {offsets = [0, 0], sizes = [2, 64], strides = [1, 1]} : vector<2x96xf32> to vector<2x64xf32>
    %398 = arith.addf %396, %397 : vector<2x64xf32>
    %399 = arith.negf %398 : vector<2x64xf32>
    %400 = math.exp %399 : vector<2x64xf32>
    %cst_132 = arith.constant 1.000000e+00 : f32
    %401 = vector.broadcast %cst_132 : f32 to vector<2x64xf32>
    %402 = arith.addf %401, %400 : vector<2x64xf32>
    %403 = arith.divf %401, %402 : vector<2x64xf32>
    %404 = vector.extract_strided_slice %403 {offsets = [0, 0], sizes = [2, 32], strides = [1, 1]} : vector<2x64xf32> to vector<2x32xf32>
    %405 = vector.extract_strided_slice %403 {offsets = [0, 32], sizes = [2, 32], strides = [1, 1]} : vector<2x64xf32> to vector<2x32xf32>
    %406 = vector.extract_strided_slice %392 {offsets = [0, 64], sizes = [2, 32], strides = [1, 1]} : vector<2x96xf32> to vector<2x32xf32>
    %407 = vector.extract_strided_slice %395 {offsets = [0, 64], sizes = [2, 32], strides = [1, 1]} : vector<2x96xf32> to vector<2x32xf32>
    %408 = arith.mulf %404, %407 : vector<2x32xf32>
    %409 = arith.addf %406, %408 : vector<2x32xf32>
    %410 = math.tanh %409 : vector<2x32xf32>
    %cst_133 = arith.constant 1.000000e+00 : f32
    %411 = vector.broadcast %cst_133 : f32 to vector<2x32xf32>
    %412 = arith.subf %411, %405 : vector<2x32xf32>
    %413 = arith.mulf %412, %410 : vector<2x32xf32>
    %414 = arith.mulf %405, %356 : vector<2x32xf32>
    %415 = arith.addf %413, %414 : vector<2x32xf32>
    %c1_134 = arith.constant 1 : index
    %416 = arith.index_cast %389 : i32 to index
    %c0_135 = arith.constant 0 : index
    %417 = vector.load %arg8[%c1_134, %416, %c0_135] : memref<2x16x96xf32, #tpu.memory_space<vmem>>, vector<1x2x96xf32>
    %418 = vector.shape_cast %417 : vector<1x2x96xf32> to vector<2x96xf32>
    %cst_136 = arith.constant dense<0.000000e+00> : vector<2x96xf32>
    %419 = tpu.matmul %382, %24, %cst_136 {dimension_numbers = #tpu.dot_dimension_numbers<[1], [0], [0], [1], [0, 0, 1, 1], [], []>} : vector<2x32xf32>, vector<32x96xf32>, vector<2x96xf32> -> vector<2x96xf32>
    %420 = vector.broadcast %28 : vector<1x96xf32> to vector<2x96xf32>
    %421 = arith.addf %419, %420 : vector<2x96xf32>
    %422 = vector.extract_strided_slice %418 {offsets = [0, 0], sizes = [2, 64], strides = [1, 1]} : vector<2x96xf32> to vector<2x64xf32>
    %423 = vector.extract_strided_slice %421 {offsets = [0, 0], sizes = [2, 64], strides = [1, 1]} : vector<2x96xf32> to vector<2x64xf32>
    %424 = arith.addf %422, %423 : vector<2x64xf32>
    %425 = arith.negf %424 : vector<2x64xf32>
    %426 = math.exp %425 : vector<2x64xf32>
    %cst_137 = arith.constant 1.000000e+00 : f32
    %427 = vector.broadcast %cst_137 : f32 to vector<2x64xf32>
    %428 = arith.addf %427, %426 : vector<2x64xf32>
    %429 = arith.divf %427, %428 : vector<2x64xf32>
    %430 = vector.extract_strided_slice %429 {offsets = [0, 0], sizes = [2, 32], strides = [1, 1]} : vector<2x64xf32> to vector<2x32xf32>
    %431 = vector.extract_strided_slice %429 {offsets = [0, 32], sizes = [2, 32], strides = [1, 1]} : vector<2x64xf32> to vector<2x32xf32>
    %432 = vector.extract_strided_slice %418 {offsets = [0, 64], sizes = [2, 32], strides = [1, 1]} : vector<2x96xf32> to vector<2x32xf32>
    %433 = vector.extract_strided_slice %421 {offsets = [0, 64], sizes = [2, 32], strides = [1, 1]} : vector<2x96xf32> to vector<2x32xf32>
    %434 = arith.mulf %430, %433 : vector<2x32xf32>
    %435 = arith.addf %432, %434 : vector<2x32xf32>
    %436 = math.tanh %435 : vector<2x32xf32>
    %cst_138 = arith.constant 1.000000e+00 : f32
    %437 = vector.broadcast %cst_138 : f32 to vector<2x32xf32>
    %438 = arith.subf %437, %431 : vector<2x32xf32>
    %439 = arith.mulf %438, %436 : vector<2x32xf32>
    %440 = arith.mulf %431, %382 : vector<2x32xf32>
    %441 = arith.addf %439, %440 : vector<2x32xf32>
    %442 = arith.index_cast %387 : i32 to index
    %c0_139 = arith.constant 0 : index
    %443 = vector.load %arg6[%442, %c0_139] : memref<16x64xf32, #tpu.memory_space<vmem>>, vector<2x32xf32>
    tpu.vector_store %arg6[%442, %c0_139], %415 {strides = array<i32>} : memref<16x64xf32, #tpu.memory_space<vmem>>, vector<2x32xf32>,
    %444 = arith.index_cast %389 : i32 to index
    %c0_140 = arith.constant 0 : index
    %445 = vector.load %arg9[%444, %c0_140] : memref<16x32xf32, #tpu.memory_space<vmem>>, vector<2x32xf32>
    tpu.vector_store %arg9[%444, %c0_140], %441 {strides = array<i32>} : memref<16x32xf32, #tpu.memory_space<vmem>>, vector<2x32xf32>,
    %c7_i32_141 = arith.constant 7 : i32
    %c2_i32_142 = arith.constant 2 : i32
    %446 = arith.muli %c7_i32_141, %c2_i32_142 : i32
    %c7_i32_143 = arith.constant 7 : i32
    %447 = arith.subi %c7_i32_143, %c7_i32_141 : i32
    %c2_i32_144 = arith.constant 2 : i32
    %448 = arith.muli %447, %c2_i32_144 : i32
    %c0_145 = arith.constant 0 : index
    %449 = arith.index_cast %446 : i32 to index
    %c0_146 = arith.constant 0 : index
    %450 = vector.load %arg8[%c0_145, %449, %c0_146] : memref<2x16x96xf32, #tpu.memory_space<vmem>>, vector<1x2x96xf32>
    %451 = vector.shape_cast %450 : vector<1x2x96xf32> to vector<2x96xf32>
    %cst_147 = arith.constant dense<0.000000e+00> : vector<2x96xf32>
    %452 = tpu.matmul %415, %22, %cst_147 {dimension_numbers = #tpu.dot_dimension_numbers<[1], [0], [0], [1], [0, 0, 1, 1], [], []>} : vector<2x32xf32>, vector<32x96xf32>, vector<2x96xf32> -> vector<2x96xf32>
    %453 = vector.broadcast %26 : vector<1x96xf32> to vector<2x96xf32>
    %454 = arith.addf %452, %453 : vector<2x96xf32>
    %455 = vector.extract_strided_slice %451 {offsets = [0, 0], sizes = [2, 64], strides = [1, 1]} : vector<2x96xf32> to vector<2x64xf32>
    %456 = vector.extract_strided_slice %454 {offsets = [0, 0], sizes = [2, 64], strides = [1, 1]} : vector<2x96xf32> to vector<2x64xf32>
    %457 = arith.addf %455, %456 : vector<2x64xf32>
    %458 = arith.negf %457 : vector<2x64xf32>
    %459 = math.exp %458 : vector<2x64xf32>
    %cst_148 = arith.constant 1.000000e+00 : f32
    %460 = vector.broadcast %cst_148 : f32 to vector<2x64xf32>
    %461 = arith.addf %460, %459 : vector<2x64xf32>
    %462 = arith.divf %460, %461 : vector<2x64xf32>
    %463 = vector.extract_strided_slice %462 {offsets = [0, 0], sizes = [2, 32], strides = [1, 1]} : vector<2x64xf32> to vector<2x32xf32>
    %464 = vector.extract_strided_slice %462 {offsets = [0, 32], sizes = [2, 32], strides = [1, 1]} : vector<2x64xf32> to vector<2x32xf32>
    %465 = vector.extract_strided_slice %451 {offsets = [0, 64], sizes = [2, 32], strides = [1, 1]} : vector<2x96xf32> to vector<2x32xf32>
    %466 = vector.extract_strided_slice %454 {offsets = [0, 64], sizes = [2, 32], strides = [1, 1]} : vector<2x96xf32> to vector<2x32xf32>
    %467 = arith.mulf %463, %466 : vector<2x32xf32>
    %468 = arith.addf %465, %467 : vector<2x32xf32>
    %469 = math.tanh %468 : vector<2x32xf32>
    %cst_149 = arith.constant 1.000000e+00 : f32
    %470 = vector.broadcast %cst_149 : f32 to vector<2x32xf32>
    %471 = arith.subf %470, %464 : vector<2x32xf32>
    %472 = arith.mulf %471, %469 : vector<2x32xf32>
    %473 = arith.mulf %464, %415 : vector<2x32xf32>
    %474 = arith.addf %472, %473 : vector<2x32xf32>
    %c1_150 = arith.constant 1 : index
    %475 = arith.index_cast %448 : i32 to index
    %c0_151 = arith.constant 0 : index
    %476 = vector.load %arg8[%c1_150, %475, %c0_151] : memref<2x16x96xf32, #tpu.memory_space<vmem>>, vector<1x2x96xf32>
    %477 = vector.shape_cast %476 : vector<1x2x96xf32> to vector<2x96xf32>
    %cst_152 = arith.constant dense<0.000000e+00> : vector<2x96xf32>
    %478 = tpu.matmul %441, %24, %cst_152 {dimension_numbers = #tpu.dot_dimension_numbers<[1], [0], [0], [1], [0, 0, 1, 1], [], []>} : vector<2x32xf32>, vector<32x96xf32>, vector<2x96xf32> -> vector<2x96xf32>
    %479 = vector.broadcast %28 : vector<1x96xf32> to vector<2x96xf32>
    %480 = arith.addf %478, %479 : vector<2x96xf32>
    %481 = vector.extract_strided_slice %477 {offsets = [0, 0], sizes = [2, 64], strides = [1, 1]} : vector<2x96xf32> to vector<2x64xf32>
    %482 = vector.extract_strided_slice %480 {offsets = [0, 0], sizes = [2, 64], strides = [1, 1]} : vector<2x96xf32> to vector<2x64xf32>
    %483 = arith.addf %481, %482 : vector<2x64xf32>
    %484 = arith.negf %483 : vector<2x64xf32>
    %485 = math.exp %484 : vector<2x64xf32>
    %cst_153 = arith.constant 1.000000e+00 : f32
    %486 = vector.broadcast %cst_153 : f32 to vector<2x64xf32>
    %487 = arith.addf %486, %485 : vector<2x64xf32>
    %488 = arith.divf %486, %487 : vector<2x64xf32>
    %489 = vector.extract_strided_slice %488 {offsets = [0, 0], sizes = [2, 32], strides = [1, 1]} : vector<2x64xf32> to vector<2x32xf32>
    %490 = vector.extract_strided_slice %488 {offsets = [0, 32], sizes = [2, 32], strides = [1, 1]} : vector<2x64xf32> to vector<2x32xf32>
    %491 = vector.extract_strided_slice %477 {offsets = [0, 64], sizes = [2, 32], strides = [1, 1]} : vector<2x96xf32> to vector<2x32xf32>
    %492 = vector.extract_strided_slice %480 {offsets = [0, 64], sizes = [2, 32], strides = [1, 1]} : vector<2x96xf32> to vector<2x32xf32>
    %493 = arith.mulf %489, %492 : vector<2x32xf32>
    %494 = arith.addf %491, %493 : vector<2x32xf32>
    %495 = math.tanh %494 : vector<2x32xf32>
    %cst_154 = arith.constant 1.000000e+00 : f32
    %496 = vector.broadcast %cst_154 : f32 to vector<2x32xf32>
    %497 = arith.subf %496, %490 : vector<2x32xf32>
    %498 = arith.mulf %497, %495 : vector<2x32xf32>
    %499 = arith.mulf %490, %441 : vector<2x32xf32>
    %500 = arith.addf %498, %499 : vector<2x32xf32>
    %501 = arith.index_cast %446 : i32 to index
    %c0_155 = arith.constant 0 : index
    %502 = vector.load %arg6[%501, %c0_155] : memref<16x64xf32, #tpu.memory_space<vmem>>, vector<2x32xf32>
    tpu.vector_store %arg6[%501, %c0_155], %474 {strides = array<i32>} : memref<16x64xf32, #tpu.memory_space<vmem>>, vector<2x32xf32>,
    %503 = arith.index_cast %448 : i32 to index
    %c0_156 = arith.constant 0 : index
    %504 = vector.load %arg9[%503, %c0_156] : memref<16x32xf32, #tpu.memory_space<vmem>>, vector<2x32xf32>
    tpu.vector_store %arg9[%503, %c0_156], %500 {strides = array<i32>} : memref<16x32xf32, #tpu.memory_space<vmem>>, vector<2x32xf32>,
    %c8_i32 = arith.constant 8 : i32
    %c0_157 = arith.constant 0 : index
    %c0_158 = arith.constant 0 : index
    %505 = vector.load %arg9[%c0_157, %c0_158] : memref<16x32xf32, #tpu.memory_space<vmem>>, vector<16x32xf32>
    %c0_159 = arith.constant 0 : index
    %c32 = arith.constant 32 : index
    %506 = vector.load %arg6[%c0_159, %c32] : memref<16x64xf32, #tpu.memory_space<vmem>>, vector<16x32xf32>
    tpu.vector_store %arg6[%c0_159, %c32], %505 {strides = array<i32>} : memref<16x64xf32, #tpu.memory_space<vmem>>, vector<16x32xf32>,
    %c0_160 = arith.constant 0 : index
    %c0_161 = arith.constant 0 : index
    %c0_162 = arith.constant 0 : index
    %507 = vector.load %arg7[%c0_160, %c0_161, %c0_162] : memref<2x2x32xf32, #tpu.memory_space<vmem>>, vector<1x2x32xf32>
    %508 = vector.shape_cast %507 : vector<1x2x32xf32> to vector<2x32xf32>
    %509 = vector.shape_cast %474 : vector<2x32xf32> to vector<1x2x32xf32>
    tpu.vector_store %arg7[%c0_160, %c0_161, %c0_162], %509 {strides = array<i32>} : memref<2x2x32xf32, #tpu.memory_space<vmem>>, vector<1x2x32xf32>,
    %c1_163 = arith.constant 1 : index
    %c0_164 = arith.constant 0 : index
    %c0_165 = arith.constant 0 : index
    %510 = vector.load %arg7[%c1_163, %c0_164, %c0_165] : memref<2x2x32xf32, #tpu.memory_space<vmem>>, vector<1x2x32xf32>
    %511 = vector.shape_cast %510 : vector<1x2x32xf32> to vector<2x32xf32>
    %512 = vector.shape_cast %500 : vector<2x32xf32> to vector<1x2x32xf32>
    tpu.vector_store %arg7[%c1_163, %c0_164, %c0_165], %512 {strides = array<i32>} : memref<2x2x32xf32, #tpu.memory_space<vmem>>, vector<1x2x32xf32>,
    return
  }
}

</mosaic_0001>

<llo_original>
// kernel: encoder_forward.1
$region0: #{encoder_forward.1}
  #allocation0 [shape = 'u32[]', space=smem, size = 0x4, offset = 0x4, fixed_abs, tag = 'smem constant byte address 0x4 - core index']
  #allocation1 [shape = 'u32[72,128]{1,0:T(1,128)}', space=vmem, size = 0x9000, scoped, tag = 'internal scratch']
  #allocation2 [shape = 'f32[2,16,96]{2,1,0:T(8,128)}', space=vmem, size = 0x4000, scoped, tag = 'scratch operand']
  #allocation3 [shape = 'f32[16,32]{1,0:T(8,128)}', space=vmem, size = 0x2000, scoped, tag = 'scratch operand']
  %s0 = inlined_call_operand.hbm [shape: f32[16,32], index: 0, kind: input, shape index: {}]
  %s1 = inlined_call_operand.hbm [shape: f32[2,32,96], index: 1, kind: input, shape index: {}]
  %s2 = inlined_call_operand.hbm [shape: f32[2,32,96], index: 2, kind: input, shape index: {}]
  %s3 = inlined_call_operand.vmem [shape: f32[2,1,96], index: 3, kind: input, shape index: {}]
  %s4 = inlined_call_operand.vmem [shape: f32[2,1,96], index: 4, kind: input, shape index: {}]
  %s5 = inlined_call_operand.vmem [shape: f32[2,2,32], index: 5, kind: input, shape index: {}]
  %s6 = inlined_call_operand.hbm [shape: f32[16,64], index: 6, kind: output, shape index: {0}]
  %s7 = inlined_call_operand.hbm [shape: f32[2,2,32], index: 7, kind: output, shape index: {1}]
  %8 = xla_tuple %s6, %s7
  %s9 = sld [smem:[#allocation0]]
  $region54: #{encoder_forward.1} parent=0
    _
  %s11 = ssub.s32 1, %s9
  %s12 = scalar_select 0, %s11, %s9
  $region1: #{encoder_forward.1} parent=0
    #allocation4 [shape = 'u8[8192]{0}', space=vmem, size = 0x2000, scoped, tag = 'input window, operand 0, single buffered']
    #allocation5 [shape = 's32[1]{0}', space=sflag, size = 0x4, scoped, tag = 'scoped memory for encoder_forward.1']
    #allocation6 [shape = 's32[1]{0}', space=sflag, size = 0x4, scoped, tag = 'scoped memory for encoder_forward.1']
    #allocation7 [shape = 'u8[32768]{0}', space=vmem, size = 0x8000, scoped, tag = 'input window, operand 1, single buffered']
    #allocation8 [shape = 's32[1]{0}', space=sflag, size = 0x4, scoped, tag = 'scoped memory for encoder_forward.1']
    #allocation9 [shape = 'u8[32768]{0}', space=vmem, size = 0x8000, scoped, tag = 'input window, operand 2, single buffered']
    #allocation10 [shape = 'u8[8192]{0}', space=vmem, size = 0x2000, scoped, tag = 'output window, operand 0, single buffered']
    #allocation11 [shape = 'u8[2048]{0}', space=vmem, size = 0x800, scoped, tag = 'output window, operand 1, single buffered']
    #allocation12 [shape = 's32[1]{0}', space=sflag, size = 0x4, scoped, tag = 'scoped memory for encoder_forward.1']
    %13 = vsyncpa [#allocation5], 0
    %14 = vsyncpa [#allocation8], 0
    %15 = vsyncpa [#allocation6], 0
    %16 = vsyncpa [#allocation12], 0
    // Predicated region
    $region2: #{encoder_forward.1} parent=1 // pred_check
      _
    $region3: #{encoder_forward.1} parent=1 // pred_check_branch
      %18 = sbr.rel (0) target = $region5
    $region4: #{encoder_forward.1} parent=1 // pred_region
      %20 = vsyncadd [#allocation5], 0
      %s21 = sshll.u32 %s0, 4
      %s22 = int_to_ptr.hbm [resolvable:$true] %s21
      %s23 = sshll.u32 [#allocation4], 4
      %s24 = int_to_ptr.vmem [resolvable:$true] %s23
      %29 = dma.hbm_to_vmem [thread:$0]  %s22, 256, %s24, [#allocation5], 128, 128, 8
    $region5: #{encoder_forward.1} parent=1 // pred_fallthru
      _
    // Predicated region
    $region6: #{encoder_forward.1} parent=1 // pred_check
      _
    $region7: #{encoder_forward.1} parent=1 // pred_check_branch
      %31 = sbr.rel (0) target = $region9
    $region8: #{encoder_forward.1} parent=1 // pred_region
      %33 = vsyncadd [#allocation8], 0
      %s34 = sshll.u32 %s1, 4
      %s35 = int_to_ptr.hbm [resolvable:$true] %s34
      %s36 = sshll.u32 [#allocation7], 4
      %s37 = int_to_ptr.vmem [resolvable:$true] %s36
      %42 = dma.hbm_to_vmem [thread:$0]  %s35, 1024, %s37, [#allocation8], 128, 128, 8
    $region9: #{encoder_forward.1} parent=1 // pred_fallthru
      _
    // Predicated region
    $region10: #{encoder_forward.1} parent=1 // pred_check
      _
    $region11: #{encoder_forward.1} parent=1 // pred_check_branch
      %44 = sbr.rel (0) target = $region13
    $region12: #{encoder_forward.1} parent=1 // pred_region
      %46 = vsyncadd [#allocation8], 0
      %s47 = sshll.u32 %s2, 4
      %s48 = int_to_ptr.hbm [resolvable:$true] %s47
      %s49 = sshll.u32 [#allocation9], 4
      %s50 = int_to_ptr.vmem [resolvable:$true] %s49
      %55 = dma.hbm_to_vmem [thread:$0]  %s48, 1024, %s50, [#allocation8], 128, 128, 8
    $region13: #{encoder_forward.1} parent=1 // pred_fallthru
      _
    // Predicated region
    $region14: #{encoder_forward.1} parent=1 // pred_check
      _
    $region15: #{encoder_forward.1} parent=1 // pred_check_branch
      %57 = sbr.rel (0) target = $region17
    $region16: #{encoder_forward.1} parent=1 // pred_region
      _
    $region17: #{encoder_forward.1} parent=1 // pred_fallthru
      _
    // Predicated region
    $region18: #{encoder_forward.1} parent=1 // pred_check
      _
    $region19: #{encoder_forward.1} parent=1 // pred_check_branch
      %59 = sbr.rel (0) target = $region21
    $region20: #{encoder_forward.1} parent=1 // pred_region
      _
    $region21: #{encoder_forward.1} parent=1 // pred_fallthru
      _
    // Predicated region
    $region22: #{encoder_forward.1} parent=1 // pred_check
      _
    $region23: #{encoder_forward.1} parent=1 // pred_check_branch
      %61 = sbr.rel (0) target = $region25
    $region24: #{encoder_forward.1} parent=1 // pred_region
      _
    $region25: #{encoder_forward.1} parent=1 // pred_fallthru
      _
    // Predicated region
    $region26: #{encoder_forward.1} parent=1 // pred_check
      _
    $region27: #{encoder_forward.1} parent=1 // pred_check_branch
      %63 = sbr.rel (0) target = $region29
    $region28: #{encoder_forward.1} parent=1 // pred_region
      %65 = dma.done [#allocation5], 256
    $region29: #{encoder_forward.1} parent=1 // pred_fallthru
      _
    // Predicated region
    $region30: #{encoder_forward.1} parent=1 // pred_check
      _
    $region31: #{encoder_forward.1} parent=1 // pred_check_branch
      %67 = sbr.rel (0) target = $region33
    $region32: #{encoder_forward.1} parent=1 // pred_region
      %69 = dma.done [#allocation8], 1024
    $region33: #{encoder_forward.1} parent=1 // pred_fallthru
      _
    // Predicated region
    $region34: #{encoder_forward.1} parent=1 // pred_check
      _
    $region35: #{encoder_forward.1} parent=1 // pred_check_branch
      %71 = sbr.rel (0) target = $region37
    $region36: #{encoder_forward.1} parent=1 // pred_region
      %73 = dma.done [#allocation8], 1024
    $region37: #{encoder_forward.1} parent=1 // pred_fallthru
      _
    %v74 = vld [vmem:[#allocation4] sm:$0xff]
    %v75 = vld [vmem:[#allocation4 + $0x8] sm:$0xff]
    %v76 = vld [vmem:[#allocation7] sm:$0xff]
    %v77 = vld [vmem:[#allocation7 + $0x8] sm:$0xff]
    %v78 = vld [vmem:[#allocation7 + $0x10] sm:$0xff]
    %v79 = vld [vmem:[#allocation7 + $0x18] sm:$0xff]
    %v80 = vld [vmem:[%s3] sm:$0x1]
    %v82 = vperm.slane %v80, 0
    %vm84 = vcmask 261120
    %v86 = vsel %vm84, %v74, 0
    %v89 = vsel %vm84, %v75, 0
    %91 = vmatpush.msra.mxu0 0.0
    %92 = vmatpush.msra.mxu0 0.0
    %93 = vmatpush.msra.mxu0 0.0
    %94 = vmatpush.msra.mxu0 0.0
    %95 = vmatpush.msra.mxu0 0.0
    %96 = vmatpush.msra.mxu0 0.0
    %97 = vmatpush.msra.mxu0 0.0
    %98 = vmatpush.msra.mxu0 0.0
    %99 = vmatpush.msra.mxu0 0.0
    %100 = vmatpush.msra.mxu0 0.0
    %101 = vmatpush.msra.mxu0 0.0
    %102 = vmatpush.msra.mxu0 0.0
    %103 = vmatpush.msra.mxu0 %v79
    %104 = vmatpush.msra.mxu0 %v78
    %105 = vmatpush.msra.mxu0 %v77
    %106 = vmatpush.msra.mxu0 %v76
    %107 = vmatmul.f32.gmra.mxu0 %v86
    %v108 = vpop.f32.mrf.mxu0
    %v109 = vadd.f32 %v82, %v108
    %110 = vmatmul.f32.gmra.mxu0 %v89
    %v111 = vpop.f32.mrf.mxu0
    %v112 = vadd.f32 %v82, %v111
    %113 = vdwg.mxu0
    %vm114 = vcmask 785408
    %115 = vst.msk [vmem:[#allocation2] sm:$0xff] %vm114, %v109
    %116 = vst.msk [vmem:[#allocation2 + $0x8] sm:$0xff] %vm114, %v112
    %s117 = scalar_lea.vmem [#allocation7], 32
    %v118 = vld [vmem:[%s117] sm:$0xff]
    %v119 = vld [vmem:[%s117 + $0x8] sm:$0xff]
    %v120 = vld [vmem:[%s117 + $0x10] sm:$0xff]
    %v121 = vld [vmem:[%s117 + $0x18] sm:$0xff]
    %s122 = scalar_lea.vmem %s3, 1
    %v123 = vld [vmem:[%s122] sm:$0x1]
    %v125 = vperm.slane %v123, 0
    %127 = vmatpush.msra.mxu0 0.0
    %128 = vmatpush.msra.mxu0 0.0
    %129 = vmatpush.msra.mxu0 0.0
    %130 = vmatpush.msra.mxu0 0.0
    %131 = vmatpush.msra.mxu0 0.0
    %132 = vmatpush.msra.mxu0 0.0
    %133 = vmatpush.msra.mxu0 0.0
    %134 = vmatpush.msra.mxu0 0.0
    %135 = vmatpush.msra.mxu0 0.0
    %136 = vmatpush.msra.mxu0 0.0
    %137 = vmatpush.msra.mxu0 0.0
    %138 = vmatpush.msra.mxu0 0.0
    %139 = vmatpush.msra.mxu0 %v121
    %140 = vmatpush.msra.mxu0 %v120
    %141 = vmatpush.msra.mxu0 %v119
    %142 = vmatpush.msra.mxu0 %v118
    %143 = vmatmul.f32.gmra.mxu0 %v86
    %v144 = vpop.f32.mrf.mxu0
    %v145 = vadd.f32 %v125, %v144
    %146 = vmatmul.f32.gmra.mxu0 %v89
    %v147 = vpop.f32.mrf.mxu0
    %v148 = vadd.f32 %v125, %v147
    %149 = vdwg.mxu0
    %s150 = scalar_lea.vmem [#allocation2], 16
    %151 = vst.msk [vmem:[%s150] sm:$0xff] %vm114, %v145
    %152 = vst.msk [vmem:[%s150 + $0x8] sm:$0xff] %vm114, %v148
    %v153 = vld [vmem:[#allocation9] sm:$0xff]
    %v154 = vld [vmem:[#allocation9 + $0x8] sm:$0xff]
    %v155 = vld [vmem:[#allocation9 + $0x10] sm:$0xff]
    %v156 = vld [vmem:[#allocation9 + $0x18] sm:$0xff]
    %s157 = scalar_lea.vmem [#allocation9], 32
    %v158 = vld [vmem:[%s157] sm:$0xff]
    %v159 = vld [vmem:[%s157 + $0x8] sm:$0xff]
    %v160 = vld [vmem:[%s157 + $0x10] sm:$0xff]
    %v161 = vld [vmem:[%s157 + $0x18] sm:$0xff]
    %v162 = vld [vmem:[%s4] sm:$0x1]
    %s163 = scalar_lea.vmem %s4, 1
    %v164 = vld [vmem:[%s163] sm:$0x1]
    %v165 = vld [vmem:[%s5] sm:$0x3]
    %s166 = scalar_lea.vmem %s5, 2
    %v167 = vld [vmem:[%s166] sm:$0x3]
    %v168 = vld [vmem:[#allocation2] sm:$0x3]
    %v170 = vperm.slane %v162, 0
    %v173 = vsel %vm84, %v165, 0
    %175 = vmatpush.msra.mxu0 0.0
    %176 = vmatpush.msra.mxu0 0.0
    %177 = vmatpush.msra.mxu0 0.0
    %178 = vmatpush.msra.mxu0 0.0
    %179 = vmatpush.msra.mxu0 0.0
    %180 = vmatpush.msra.mxu0 0.0
    %181 = vmatpush.msra.mxu0 0.0
    %182 = vmatpush.msra.mxu0 0.0
    %183 = vmatpush.msra.mxu0 0.0
    %184 = vmatpush.msra.mxu0 0.0
    %185 = vmatpush.msra.mxu0 0.0
    %186 = vmatpush.msra.mxu0 0.0
    %187 = vmatpush.msra.mxu0 %v156
    %188 = vmatpush.msra.mxu0 %v155
    %189 = vmatpush.msra.mxu0 %v154
    %190 = vmatpush.msra.mxu0 %v153
    %191 = vmatmul.f32.gmra.mxu0 %v173
    %v192 = vpop.f32.mrf.mxu0
    %v193 = vadd.f32 %v170, %v192
    %194 = vdwg.mxu0
    %v195 = vadd.f32 %v168, %v193
    %v196 = vxor.u32 %v195, 2147483648
    %v197 = vmul.f32 %v196, 1.442695
    %v198 = vpow.pop %v197
    %v199 = vadd.f32 %v198, 1.0
    %v200 = vrcp.pop %v199
    %v201 = vmul.f32 %v199, %v200
    %v202 = vsub.f32 1.0, %v201
    %v203 = vmul.f32 %v200, %v202
    %v204 = vadd.f32 %v200, %v203
    %vm205 = vweird.f32 %v199
    %vm206 = vweird.f32 %v200
    %vm207 = vmor %vm205, %vm206
    %v208 = vsel %vm207, %v200, %v204
    %v209 = vand.u32 2147483647, %v199
    %vm210 = vcmp.eq.f32.partialorder %v209, 8.507059e+37
    %v211 = vand.u32 %v199, 2147483648
    %v212 = vor.u32 1.1754944e-38, %v211
    %v213 = vsel %vm210, %v212, %v208
    %v214 = vmul.f32 1.0, %v213
    %216 = vrot.lane.b32.xlu0 %v193, 64
    %v217 = vpop.permute.xlu0 %216
    %v219 = vmul.f32 %v214, %v217
    %221 = vrot.lane.b32.xlu0 %v219, 64
    %v222 = vpop.permute.xlu0 %221
    %v224 = vadd.f32 %v168, %v222
    %v225 = vtanh.pop %v224
    %v226 = vsub.f32 1.0, %v214
    %228 = vrot.lane.b32.xlu0 %v225, 96
    %v229 = vpop.permute.xlu0 %228
    %v231 = vmul.f32 %v226, %v229
    %232 = vrot.lane.b32.xlu0 %v165, 32
    %v233 = vpop.permute.xlu0 %232
    %v235 = vmul.f32 %v214, %v233
    %v236 = vadd.f32 %v231, %v235
    %v237 = vld [vmem:[%s150 + $0xe] sm:$0x3]
    %v239 = vperm.slane %v164, 0
    %v242 = vsel %vm84, %v167, 0
    %244 = vmatpush.msra.mxu0 0.0
    %245 = vmatpush.msra.mxu0 0.0
    %246 = vmatpush.msra.mxu0 0.0
    %247 = vmatpush.msra.mxu0 0.0
    %248 = vmatpush.msra.mxu0 0.0
    %249 = vmatpush.msra.mxu0 0.0
    %250 = vmatpush.msra.mxu0 0.0
    %251 = vmatpush.msra.mxu0 0.0
    %252 = vmatpush.msra.mxu0 0.0
    %253 = vmatpush.msra.mxu0 0.0
    %254 = vmatpush.msra.mxu0 0.0
    %255 = vmatpush.msra.mxu0 0.0
    %256 = vmatpush.msra.mxu0 %v161
    %257 = vmatpush.msra.mxu0 %v160
    %258 = vmatpush.msra.mxu0 %v159
    %259 = vmatpush.msra.mxu0 %v158
    %260 = vmatmul.f32.gmra.mxu0 %v242
    %v261 = vpop.f32.mrf.mxu0
    %v262 = vadd.f32 %v239, %v261
    %263 = vdwg.mxu0
    %v264 = vadd.f32 %v237, %v262
    %v265 = vxor.u32 %v264, 2147483648
    %v266 = vmul.f32 %v265, 1.442695
    %v267 = vpow.pop %v266
    %v268 = vadd.f32 %v267, 1.0
    %v269 = vrcp.pop %v268
    %v270 = vmul.f32 %v268, %v269
    %v271 = vsub.f32 1.0, %v270
    %v272 = vmul.f32 %v269, %v271
    %v273 = vadd.f32 %v269, %v272
    %vm274 = vweird.f32 %v268
    %vm275 = vweird.f32 %v269
    %vm276 = vmor %vm274, %vm275
    %v277 = vsel %vm276, %v269, %v273
    %v278 = vand.u32 2147483647, %v268
    %vm279 = vcmp.eq.f32.partialorder %v278, 8.507059e+37
    %v280 = vand.u32 %v268, 2147483648
    %v281 = vor.u32 1.1754944e-38, %v280
    %v282 = vsel %vm279, %v281, %v277
    %v283 = vmul.f32 1.0, %v282
    %285 = vrot.lane.b32.xlu0 %v262, 64
    %v286 = vpop.permute.xlu0 %285
    %v288 = vmul.f32 %v283, %v286
    %290 = vrot.lane.b32.xlu0 %v288, 64
    %v291 = vpop.permute.xlu0 %290
    %v293 = vadd.f32 %v237, %v291
    %v294 = vtanh.pop %v293
    %v295 = vsub.f32 1.0, %v283
    %297 = vrot.lane.b32.xlu0 %v294, 96
    %v298 = vpop.permute.xlu0 %297
    %v300 = vmul.f32 %v295, %v298
    %301 = vrot.lane.b32.xlu0 %v167, 32
    %v302 = vpop.permute.xlu0 %301
    %v304 = vmul.f32 %v283, %v302
    %v305 = vadd.f32 %v300, %v304
    %307 = vrot.lane.b32.xlu0 %v236, 96
    %v308 = vpop.permute.xlu0 %307
    %vm310 = vcmask 254976
    %311 = vst.msk [vmem:[#allocation10] sm:$0x3] %vm310, %v308
    %313 = vrot.lane.b32.xlu0 %v305, 96
    %v314 = vpop.permute.xlu0 %313
    %316 = vst.msk [vmem:[#allocation3 + $0xe] sm:$0x3] %vm310, %v314
    %v317 = vld [vmem:[#allocation2 + $0x2] sm:$0x3]
    %v318 = vsel %vm84, %v308, 0
    %320 = vmatpush.msra.mxu0 0.0
    %321 = vmatpush.msra.mxu0 0.0
    %322 = vmatpush.msra.mxu0 0.0
    %323 = vmatpush.msra.mxu0 0.0
    %324 = vmatpush.msra.mxu0 0.0
    %325 = vmatpush.msra.mxu0 0.0
    %326 = vmatpush.msra.mxu0 0.0
    %327 = vmatpush.msra.mxu0 0.0
    %328 = vmatpush.msra.mxu0 0.0
    %329 = vmatpush.msra.mxu0 0.0
    %330 = vmatpush.msra.mxu0 0.0
    %331 = vmatpush.msra.mxu0 0.0
    %332 = vmatpush.msra.mxu0 %v156
    %333 = vmatpush.msra.mxu0 %v155
    %334 = vmatpush.msra.mxu0 %v154
    %335 = vmatpush.msra.mxu0 %v153
    %336 = vmatmul.f32.gmra.mxu0 %v318
    %v337 = vpop.f32.mrf.mxu0
    %v338 = vadd.f32 %v170, %v337
    %339 = vdwg.mxu0
    %v340 = vadd.f32 %v317, %v338
    %v341 = vxor.u32 %v340, 2147483648
    %v342 = vmul.f32 %v341, 1.442695
    %v343 = vpow.pop %v342
    %v344 = vadd.f32 %v343, 1.0
    %v345 = vrcp.pop %v344
    %v346 = vmul.f32 %v344, %v345
    %v347 = vsub.f32 1.0, %v346
    %v348 = vmul.f32 %v345, %v347
    %v349 = vadd.f32 %v345, %v348
    %vm350 = vweird.f32 %v344
    %vm351 = vweird.f32 %v345
    %vm352 = vmor %vm350, %vm351
    %v353 = vsel %vm352, %v345, %v349
    %v354 = vand.u32 2147483647, %v344
    %vm355 = vcmp.eq.f32.partialorder %v354, 8.507059e+37
    %v356 = vand.u32 %v344, 2147483648
    %v357 = vor.u32 1.1754944e-38, %v356
    %v358 = vsel %vm355, %v357, %v353
    %v359 = vmul.f32 1.0, %v358
    %361 = vrot.lane.b32.xlu0 %v338, 64
    %v362 = vpop.permute.xlu0 %361
    %v364 = vmul.f32 %v359, %v362
    %366 = vrot.lane.b32.xlu0 %v364, 64
    %v367 = vpop.permute.xlu0 %366
    %v369 = vadd.f32 %v317, %v367
    %v370 = vtanh.pop %v369
    %v371 = vsub.f32 1.0, %v359
    %373 = vrot.lane.b32.xlu0 %v370, 96
    %v374 = vpop.permute.xlu0 %373
    %v376 = vmul.f32 %v371, %v374
    %v377 = vmul.f32 %v359, %v236
    %v378 = vadd.f32 %v376, %v377
    %v379 = vld [vmem:[%s150 + $0xc] sm:$0x3]
    %v380 = vsel %vm84, %v314, 0
    %382 = vmatpush.msra.mxu0 0.0
    %383 = vmatpush.msra.mxu0 0.0
    %384 = vmatpush.msra.mxu0 0.0
    %385 = vmatpush.msra.mxu0 0.0
    %386 = vmatpush.msra.mxu0 0.0
    %387 = vmatpush.msra.mxu0 0.0
    %388 = vmatpush.msra.mxu0 0.0
    %389 = vmatpush.msra.mxu0 0.0
    %390 = vmatpush.msra.mxu0 0.0
    %391 = vmatpush.msra.mxu0 0.0
    %392 = vmatpush.msra.mxu0 0.0
    %393 = vmatpush.msra.mxu0 0.0
    %394 = vmatpush.msra.mxu0 %v161
    %395 = vmatpush.msra.mxu0 %v160
    %396 = vmatpush.msra.mxu0 %v159
    %397 = vmatpush.msra.mxu0 %v158
    %398 = vmatmul.f32.gmra.mxu0 %v380
    %v399 = vpop.f32.mrf.mxu0
    %v400 = vadd.f32 %v239, %v399
    %401 = vdwg.mxu0
    %v402 = vadd.f32 %v379, %v400
    %v403 = vxor.u32 %v402, 2147483648
    %v404 = vmul.f32 %v403, 1.442695
    %v405 = vpow.pop %v404
    %v406 = vadd.f32 %v405, 1.0
    %v407 = vrcp.pop %v406
    %v408 = vmul.f32 %v406, %v407
    %v409 = vsub.f32 1.0, %v408
    %v410 = vmul.f32 %v407, %v409
    %v411 = vadd.f32 %v407, %v410
    %vm412 = vweird.f32 %v406
    %vm413 = vweird.f32 %v407
    %vm414 = vmor %vm412, %vm413
    %v415 = vsel %vm414, %v407, %v411
    %v416 = vand.u32 2147483647, %v406
    %vm417 = vcmp.eq.f32.partialorder %v416, 8.507059e+37
    %v418 = vand.u32 %v406, 2147483648
    %v419 = vor.u32 1.1754944e-38, %v418
    %v420 = vsel %vm417, %v419, %v415
    %v421 = vmul.f32 1.0, %v420
    %423 = vrot.lane.b32.xlu0 %v400, 64
    %v424 = vpop.permute.xlu0 %423
    %v426 = vmul.f32 %v421, %v424
    %428 = vrot.lane.b32.xlu0 %v426, 64
    %v429 = vpop.permute.xlu0 %428
    %v431 = vadd.f32 %v379, %v429
    %v432 = vtanh.pop %v431
    %v433 = vsub.f32 1.0, %v421
    %435 = vrot.lane.b32.xlu0 %v432, 96
    %v436 = vpop.permute.xlu0 %435
    %v438 = vmul.f32 %v433, %v436
    %v439 = vmul.f32 %v421, %v305
    %v440 = vadd.f32 %v438, %v439
    %442 = vrot.lane.b32.xlu0 %v378, 96
    %v443 = vpop.permute.xlu0 %442
    %445 = vst.msk [vmem:[#allocation10 + $0x2] sm:$0x3] %vm310, %v443
    %447 = vrot.lane.b32.xlu0 %v440, 96
    %v448 = vpop.permute.xlu0 %447
    %450 = vst.msk [vmem:[#allocation3 + $0xc] sm:$0x3] %vm310, %v448
    %v451 = vld [vmem:[#allocation2 + $0x4] sm:$0x3]
    %v452 = vsel %vm84, %v443, 0
    %454 = vmatpush.msra.mxu0 0.0
    %455 = vmatpush.msra.mxu0 0.0
    %456 = vmatpush.msra.mxu0 0.0
    %457 = vmatpush.msra.mxu0 0.0
    %458 = vmatpush.msra.mxu0 0.0
    %459 = vmatpush.msra.mxu0 0.0
    %460 = vmatpush.msra.mxu0 0.0
    %461 = vmatpush.msra.mxu0 0.0
    %462 = vmatpush.msra.mxu0 0.0
    %463 = vmatpush.msra.mxu0 0.0
    %464 = vmatpush.msra.mxu0 0.0
    %465 = vmatpush.msra.mxu0 0.0
    %466 = vmatpush.msra.mxu0 %v156
    %467 = vmatpush.msra.mxu0 %v155
    %468 = vmatpush.msra.mxu0 %v154
    %469 = vmatpush.msra.mxu0 %v153
    %470 = vmatmul.f32.gmra.mxu0 %v452
    %v471 = vpop.f32.mrf.mxu0
    %v472 = vadd.f32 %v170, %v471
    %473 = vdwg.mxu0
    %v474 = vadd.f32 %v451, %v472
    %v475 = vxor.u32 %v474, 2147483648
    %v476 = vmul.f32 %v475, 1.442695
    %v477 = vpow.pop %v476
    %v478 = vadd.f32 %v477, 1.0
    %v479 = vrcp.pop %v478
    %v480 = vmul.f32 %v478, %v479
    %v481 = vsub.f32 1.0, %v480
    %v482 = vmul.f32 %v479, %v481
    %v483 = vadd.f32 %v479, %v482
    %vm484 = vweird.f32 %v478
    %vm485 = vweird.f32 %v479
    %vm486 = vmor %vm484, %vm485
    %v487 = vsel %vm486, %v479, %v483
    %v488 = vand.u32 2147483647, %v478
    %vm489 = vcmp.eq.f32.partialorder %v488, 8.507059e+37
    %v490 = vand.u32 %v478, 2147483648
    %v491 = vor.u32 1.1754944e-38, %v490
    %v492 = vsel %vm489, %v491, %v487
    %v493 = vmul.f32 1.0, %v492
    %495 = vrot.lane.b32.xlu0 %v472, 64
    %v496 = vpop.permute.xlu0 %495
    %v498 = vmul.f32 %v493, %v496
    %500 = vrot.lane.b32.xlu0 %v498, 64
    %v501 = vpop.permute.xlu0 %500
    %v503 = vadd.f32 %v451, %v501
    %v504 = vtanh.pop %v503
    %v505 = vsub.f32 1.0, %v493
    %507 = vrot.lane.b32.xlu0 %v504, 96
    %v508 = vpop.permute.xlu0 %507
    %v510 = vmul.f32 %v505, %v508
    %v511 = vmul.f32 %v493, %v378
    %v512 = vadd.f32 %v510, %v511
    %v513 = vld [vmem:[%s150 + $0xa] sm:$0x3]
    %v514 = vsel %vm84, %v448, 0
    %516 = vmatpush.msra.mxu0 0.0
    %517 = vmatpush.msra.mxu0 0.0
    %518 = vmatpush.msra.mxu0 0.0
    %519 = vmatpush.msra.mxu0 0.0
    %520 = vmatpush.msra.mxu0 0.0
    %521 = vmatpush.msra.mxu0 0.0
    %522 = vmatpush.msra.mxu0 0.0
    %523 = vmatpush.msra.mxu0 0.0
    %524 = vmatpush.msra.mxu0 0.0
    %525 = vmatpush.msra.mxu0 0.0
    %526 = vmatpush.msra.mxu0 0.0
    %527 = vmatpush.msra.mxu0 0.0
    %528 = vmatpush.msra.mxu0 %v161
    %529 = vmatpush.msra.mxu0 %v160
    %530 = vmatpush.msra.mxu0 %v159
    %531 = vmatpush.msra.mxu0 %v158
    %532 = vmatmul.f32.gmra.mxu0 %v514
    %v533 = vpop.f32.mrf.mxu0
    %v534 = vadd.f32 %v239, %v533
    %535 = vdwg.mxu0
    %v536 = vadd.f32 %v513, %v534
    %v537 = vxor.u32 %v536, 2147483648
    %v538 = vmul.f32 %v537, 1.442695
    %v539 = vpow.pop %v538
    %v540 = vadd.f32 %v539, 1.0
    %v541 = vrcp.pop %v540
    %v542 = vmul.f32 %v540, %v541
    %v543 = vsub.f32 1.0, %v542
    %v544 = vmul.f32 %v541, %v543
    %v545 = vadd.f32 %v541, %v544
    %vm546 = vweird.f32 %v540
    %vm547 = vweird.f32 %v541
    %vm548 = vmor %vm546, %vm547
    %v549 = vsel %vm548, %v541, %v545
    %v550 = vand.u32 2147483647, %v540
    %vm551 = vcmp.eq.f32.partialorder %v550, 8.507059e+37
    %v552 = vand.u32 %v540, 2147483648
    %v553 = vor.u32 1.1754944e-38, %v552
    %v554 = vsel %vm551, %v553, %v549
    %v555 = vmul.f32 1.0, %v554
    %557 = vrot.lane.b32.xlu0 %v534, 64
    %v558 = vpop.permute.xlu0 %557
    %v560 = vmul.f32 %v555, %v558
    %562 = vrot.lane.b32.xlu0 %v560, 64
    %v563 = vpop.permute.xlu0 %562
    %v565 = vadd.f32 %v513, %v563
    %v566 = vtanh.pop %v565
    %v567 = vsub.f32 1.0, %v555
    %569 = vrot.lane.b32.xlu0 %v566, 96
    %v570 = vpop.permute.xlu0 %569
    %v572 = vmul.f32 %v567, %v570
    %v573 = vmul.f32 %v555, %v440
    %v574 = vadd.f32 %v572, %v573
    %576 = vrot.lane.b32.xlu0 %v512, 96
    %v577 = vpop.permute.xlu0 %576
    %579 = vst.msk [vmem:[#allocation10 + $0x4] sm:$0x3] %vm310, %v577
    %581 = vrot.lane.b32.xlu0 %v574, 96
    %v582 = vpop.permute.xlu0 %581
    %584 = vst.msk [vmem:[#allocation3 + $0xa] sm:$0x3] %vm310, %v582
    %v585 = vld [vmem:[#allocation2 + $0x6] sm:$0x3]
    %v586 = vsel %vm84, %v577, 0
    %588 = vmatpush.msra.mxu0 0.0
    %589 = vmatpush.msra.mxu0 0.0
    %590 = vmatpush.msra.mxu0 0.0
    %591 = vmatpush.msra.mxu0 0.0
    %592 = vmatpush.msra.mxu0 0.0
    %593 = vmatpush.msra.mxu0 0.0
    %594 = vmatpush.msra.mxu0 0.0
    %595 = vmatpush.msra.mxu0 0.0
    %596 = vmatpush.msra.mxu0 0.0
    %597 = vmatpush.msra.mxu0 0.0
    %598 = vmatpush.msra.mxu0 0.0
    %599 = vmatpush.msra.mxu0 0.0
    %600 = vmatpush.msra.mxu0 %v156
    %601 = vmatpush.msra.mxu0 %v155
    %602 = vmatpush.msra.mxu0 %v154
    %603 = vmatpush.msra.mxu0 %v153
    %604 = vmatmul.f32.gmra.mxu0 %v586
    %v605 = vpop.f32.mrf.mxu0
    %v606 = vadd.f32 %v170, %v605
    %607 = vdwg.mxu0
    %v608 = vadd.f32 %v585, %v606
    %v609 = vxor.u32 %v608, 2147483648
    %v610 = vmul.f32 %v609, 1.442695
    %v611 = vpow.pop %v610
    %v612 = vadd.f32 %v611, 1.0
    %v613 = vrcp.pop %v612
    %v614 = vmul.f32 %v612, %v613
    %v615 = vsub.f32 1.0, %v614
    %v616 = vmul.f32 %v613, %v615
    %v617 = vadd.f32 %v613, %v616
    %vm618 = vweird.f32 %v612
    %vm619 = vweird.f32 %v613
    %vm620 = vmor %vm618, %vm619
    %v621 = vsel %vm620, %v613, %v617
    %v622 = vand.u32 2147483647, %v612
    %vm623 = vcmp.eq.f32.partialorder %v622, 8.507059e+37
    %v624 = vand.u32 %v612, 2147483648
    %v625 = vor.u32 1.1754944e-38, %v624
    %v626 = vsel %vm623, %v625, %v621
    %v627 = vmul.f32 1.0, %v626
    %629 = vrot.lane.b32.xlu0 %v606, 64
    %v630 = vpop.permute.xlu0 %629
    %v632 = vmul.f32 %v627, %v630
    %634 = vrot.lane.b32.xlu0 %v632, 64
    %v635 = vpop.permute.xlu0 %634
    %v637 = vadd.f32 %v585, %v635
    %v638 = vtanh.pop %v637
    %v639 = vsub.f32 1.0, %v627
    %641 = vrot.lane.b32.xlu0 %v638, 96
    %v642 = vpop.permute.xlu0 %641
    %v644 = vmul.f32 %v639, %v642
    %v645 = vmul.f32 %v627, %v512
    %v646 = vadd.f32 %v644, %v645
    %v647 = vld [vmem:[%s150 + $0x8] sm:$0x3]
    %v648 = vsel %vm84, %v582, 0
    %650 = vmatpush.msra.mxu0 0.0
    %651 = vmatpush.msra.mxu0 0.0
    %652 = vmatpush.msra.mxu0 0.0
    %653 = vmatpush.msra.mxu0 0.0
    %654 = vmatpush.msra.mxu0 0.0
    %655 = vmatpush.msra.mxu0 0.0
    %656 = vmatpush.msra.mxu0 0.0
    %657 = vmatpush.msra.mxu0 0.0
    %658 = vmatpush.msra.mxu0 0.0
    %659 = vmatpush.msra.mxu0 0.0
    %660 = vmatpush.msra.mxu0 0.0
    %661 = vmatpush.msra.mxu0 0.0
    %662 = vmatpush.msra.mxu0 %v161
    %663 = vmatpush.msra.mxu0 %v160
    %664 = vmatpush.msra.mxu0 %v159
    %665 = vmatpush.msra.mxu0 %v158
    %666 = vmatmul.f32.gmra.mxu0 %v648
    %v667 = vpop.f32.mrf.mxu0
    %v668 = vadd.f32 %v239, %v667
    %669 = vdwg.mxu0
    %v670 = vadd.f32 %v647, %v668
    %v671 = vxor.u32 %v670, 2147483648
    %v672 = vmul.f32 %v671, 1.442695
    %v673 = vpow.pop %v672
    %v674 = vadd.f32 %v673, 1.0
    %v675 = vrcp.pop %v674
    %v676 = vmul.f32 %v674, %v675
    %v677 = vsub.f32 1.0, %v676
    %v678 = vmul.f32 %v675, %v677
    %v679 = vadd.f32 %v675, %v678
    %vm680 = vweird.f32 %v674
    %vm681 = vweird.f32 %v675
    %vm682 = vmor %vm680, %vm681
    %v683 = vsel %vm682, %v675, %v679
    %v684 = vand.u32 2147483647, %v674
    %vm685 = vcmp.eq.f32.partialorder %v684, 8.507059e+37
    %v686 = vand.u32 %v674, 2147483648
    %v687 = vor.u32 1.1754944e-38, %v686
    %v688 = vsel %vm685, %v687, %v683
    %v689 = vmul.f32 1.0, %v688
    %691 = vrot.lane.b32.xlu0 %v668, 64
    %v692 = vpop.permute.xlu0 %691
    %v694 = vmul.f32 %v689, %v692
    %696 = vrot.lane.b32.xlu0 %v694, 64
    %v697 = vpop.permute.xlu0 %696
    %v699 = vadd.f32 %v647, %v697
    %v700 = vtanh.pop %v699
    %v701 = vsub.f32 1.0, %v689
    %703 = vrot.lane.b32.xlu0 %v700, 96
    %v704 = vpop.permute.xlu0 %703
    %v706 = vmul.f32 %v701, %v704
    %v707 = vmul.f32 %v689, %v574
    %v708 = vadd.f32 %v706, %v707
    %710 = vrot.lane.b32.xlu0 %v646, 96
    %v711 = vpop.permute.xlu0 %710
    %713 = vst.msk [vmem:[#allocation10 + $0x6] sm:$0x3] %vm310, %v711
    %715 = vrot.lane.b32.xlu0 %v708, 96
    %v716 = vpop.permute.xlu0 %715
    %718 = vst.msk [vmem:[#allocation3 + $0x8] sm:$0x3] %vm310, %v716
    %v719 = vld [vmem:[#allocation2 + $0x8] sm:$0x3]
    %v720 = vsel %vm84, %v711, 0
    %722 = vmatpush.msra.mxu0 0.0
    %723 = vmatpush.msra.mxu0 0.0
    %724 = vmatpush.msra.mxu0 0.0
    %725 = vmatpush.msra.mxu0 0.0
    %726 = vmatpush.msra.mxu0 0.0
    %727 = vmatpush.msra.mxu0 0.0
    %728 = vmatpush.msra.mxu0 0.0
    %729 = vmatpush.msra.mxu0 0.0
    %730 = vmatpush.msra.mxu0 0.0
    %731 = vmatpush.msra.mxu0 0.0
    %732 = vmatpush.msra.mxu0 0.0
    %733 = vmatpush.msra.mxu0 0.0
    %734 = vmatpush.msra.mxu0 %v156
    %735 = vmatpush.msra.mxu0 %v155
    %736 = vmatpush.msra.mxu0 %v154
    %737 = vmatpush.msra.mxu0 %v153
    %738 = vmatmul.f32.gmra.mxu0 %v720
    %v739 = vpop.f32.mrf.mxu0
    %v740 = vadd.f32 %v170, %v739
    %741 = vdwg.mxu0
    %v742 = vadd.f32 %v719, %v740
    %v743 = vxor.u32 %v742, 2147483648
    %v744 = vmul.f32 %v743, 1.442695
    %v745 = vpow.pop %v744
    %v746 = vadd.f32 %v745, 1.0
    %v747 = vrcp.pop %v746
    %v748 = vmul.f32 %v746, %v747
    %v749 = vsub.f32 1.0, %v748
    %v750 = vmul.f32 %v747, %v749
    %v751 = vadd.f32 %v747, %v750
    %vm752 = vweird.f32 %v746
    %vm753 = vweird.f32 %v747
    %vm754 = vmor %vm752, %vm753
    %v755 = vsel %vm754, %v747, %v751
    %v756 = vand.u32 2147483647, %v746
    %vm757 = vcmp.eq.f32.partialorder %v756, 8.507059e+37
    %v758 = vand.u32 %v746, 2147483648
    %v759 = vor.u32 1.1754944e-38, %v758
    %v760 = vsel %vm757, %v759, %v755
    %v761 = vmul.f32 1.0, %v760
    %763 = vrot.lane.b32.xlu0 %v740, 64
    %v764 = vpop.permute.xlu0 %763
    %v766 = vmul.f32 %v761, %v764
    %768 = vrot.lane.b32.xlu0 %v766, 64
    %v769 = vpop.permute.xlu0 %768
    %v771 = vadd.f32 %v719, %v769
    %v772 = vtanh.pop %v771
    %v773 = vsub.f32 1.0, %v761
    %775 = vrot.lane.b32.xlu0 %v772, 96
    %v776 = vpop.permute.xlu0 %775
    %v778 = vmul.f32 %v773, %v776
    %v779 = vmul.f32 %v761, %v646
    %v780 = vadd.f32 %v778, %v779
    %v781 = vld [vmem:[%s150 + $0x6] sm:$0x3]
    %v782 = vsel %vm84, %v716, 0
    %784 = vmatpush.msra.mxu0 0.0
    %785 = vmatpush.msra.mxu0 0.0
    %786 = vmatpush.msra.mxu0 0.0
    %787 = vmatpush.msra.mxu0 0.0
    %788 = vmatpush.msra.mxu0 0.0
    %789 = vmatpush.msra.mxu0 0.0
    %790 = vmatpush.msra.mxu0 0.0
    %791 = vmatpush.msra.mxu0 0.0
    %792 = vmatpush.msra.mxu0 0.0
    %793 = vmatpush.msra.mxu0 0.0
    %794 = vmatpush.msra.mxu0 0.0
    %795 = vmatpush.msra.mxu0 0.0
    %796 = vmatpush.msra.mxu0 %v161
    %797 = vmatpush.msra.mxu0 %v160
    %798 = vmatpush.msra.mxu0 %v159
    %799 = vmatpush.msra.mxu0 %v158
    %800 = vmatmul.f32.gmra.mxu0 %v782
    %v801 = vpop.f32.mrf.mxu0
    %v802 = vadd.f32 %v239, %v801
    %803 = vdwg.mxu0
    %v804 = vadd.f32 %v781, %v802
    %v805 = vxor.u32 %v804, 2147483648
    %v806 = vmul.f32 %v805, 1.442695
    %v807 = vpow.pop %v806
    %v808 = vadd.f32 %v807, 1.0
    %v809 = vrcp.pop %v808
    %v810 = vmul.f32 %v808, %v809
    %v811 = vsub.f32 1.0, %v810
    %v812 = vmul.f32 %v809, %v811
    %v813 = vadd.f32 %v809, %v812
    %vm814 = vweird.f32 %v808
    %vm815 = vweird.f32 %v809
    %vm816 = vmor %vm814, %vm815
    %v817 = vsel %vm816, %v809, %v813
    %v818 = vand.u32 2147483647, %v808
    %vm819 = vcmp.eq.f32.partialorder %v818, 8.507059e+37
    %v820 = vand.u32 %v808, 2147483648
    %v821 = vor.u32 1.1754944e-38, %v820
    %v822 = vsel %vm819, %v821, %v817
    %v823 = vmul.f32 1.0, %v822
    %825 = vrot.lane.b32.xlu0 %v802, 64
    %v826 = vpop.permute.xlu0 %825
    %v828 = vmul.f32 %v823, %v826
    %830 = vrot.lane.b32.xlu0 %v828, 64
    %v831 = vpop.permute.xlu0 %830
    %v833 = vadd.f32 %v781, %v831
    %v834 = vtanh.pop %v833
    %v835 = vsub.f32 1.0, %v823
    %837 = vrot.lane.b32.xlu0 %v834, 96
    %v838 = vpop.permute.xlu0 %837
    %v840 = vmul.f32 %v835, %v838
    %v841 = vmul.f32 %v823, %v708
    %v842 = vadd.f32 %v840, %v841
    %844 = vrot.lane.b32.xlu0 %v780, 96
    %v845 = vpop.permute.xlu0 %844
    %847 = vst.msk [vmem:[#allocation10 + $0x8] sm:$0x3] %vm310, %v845
    %849 = vrot.lane.b32.xlu0 %v842, 96
    %v850 = vpop.permute.xlu0 %849
    %852 = vst.msk [vmem:[#allocation3 + $0x6] sm:$0x3] %vm310, %v850
    %v853 = vld [vmem:[#allocation2 + $0xa] sm:$0x3]
    %v854 = vsel %vm84, %v845, 0
    %856 = vmatpush.msra.mxu0 0.0
    %857 = vmatpush.msra.mxu0 0.0
    %858 = vmatpush.msra.mxu0 0.0
    %859 = vmatpush.msra.mxu0 0.0
    %860 = vmatpush.msra.mxu0 0.0
    %861 = vmatpush.msra.mxu0 0.0
    %862 = vmatpush.msra.mxu0 0.0
    %863 = vmatpush.msra.mxu0 0.0
    %864 = vmatpush.msra.mxu0 0.0
    %865 = vmatpush.msra.mxu0 0.0
    %866 = vmatpush.msra.mxu0 0.0
    %867 = vmatpush.msra.mxu0 0.0
    %868 = vmatpush.msra.mxu0 %v156
    %869 = vmatpush.msra.mxu0 %v155
    %870 = vmatpush.msra.mxu0 %v154
    %871 = vmatpush.msra.mxu0 %v153
    %872 = vmatmul.f32.gmra.mxu0 %v854
    %v873 = vpop.f32.mrf.mxu0
    %v874 = vadd.f32 %v170, %v873
    %875 = vdwg.mxu0
    %v876 = vadd.f32 %v853, %v874
    %v877 = vxor.u32 %v876, 2147483648
    %v878 = vmul.f32 %v877, 1.442695
    %v879 = vpow.pop %v878
    %v880 = vadd.f32 %v879, 1.0
    %v881 = vrcp.pop %v880
    %v882 = vmul.f32 %v880, %v881
    %v883 = vsub.f32 1.0, %v882
    %v884 = vmul.f32 %v881, %v883
    %v885 = vadd.f32 %v881, %v884
    %vm886 = vweird.f32 %v880
    %vm887 = vweird.f32 %v881
    %vm888 = vmor %vm886, %vm887
    %v889 = vsel %vm888, %v881, %v885
    %v890 = vand.u32 2147483647, %v880
    %vm891 = vcmp.eq.f32.partialorder %v890, 8.507059e+37
    %v892 = vand.u32 %v880, 2147483648
    %v893 = vor.u32 1.1754944e-38, %v892
    %v894 = vsel %vm891, %v893, %v889
    %v895 = vmul.f32 1.0, %v894
    %897 = vrot.lane.b32.xlu0 %v874, 64
    %v898 = vpop.permute.xlu0 %897
    %v900 = vmul.f32 %v895, %v898
    %902 = vrot.lane.b32.xlu0 %v900, 64
    %v903 = vpop.permute.xlu0 %902
    %v905 = vadd.f32 %v853, %v903
    %v906 = vtanh.pop %v905
    %v907 = vsub.f32 1.0, %v895
    %909 = vrot.lane.b32.xlu0 %v906, 96
    %v910 = vpop.permute.xlu0 %909
    %v912 = vmul.f32 %v907, %v910
    %v913 = vmul.f32 %v895, %v780
    %v914 = vadd.f32 %v912, %v913
    %v915 = vld [vmem:[%s150 + $0x4] sm:$0x3]
    %v916 = vsel %vm84, %v850, 0
    %918 = vmatpush.msra.mxu0 0.0
    %919 = vmatpush.msra.mxu0 0.0
    %920 = vmatpush.msra.mxu0 0.0
    %921 = vmatpush.msra.mxu0 0.0
    %922 = vmatpush.msra.mxu0 0.0
    %923 = vmatpush.msra.mxu0 0.0
    %924 = vmatpush.msra.mxu0 0.0
    %925 = vmatpush.msra.mxu0 0.0
    %926 = vmatpush.msra.mxu0 0.0
    %927 = vmatpush.msra.mxu0 0.0
    %928 = vmatpush.msra.mxu0 0.0
    %929 = vmatpush.msra.mxu0 0.0
    %930 = vmatpush.msra.mxu0 %v161
    %931 = vmatpush.msra.mxu0 %v160
    %932 = vmatpush.msra.mxu0 %v159
    %933 = vmatpush.msra.mxu0 %v158
    %934 = vmatmul.f32.gmra.mxu0 %v916
    %v935 = vpop.f32.mrf.mxu0
    %v936 = vadd.f32 %v239, %v935
    %937 = vdwg.mxu0
    %v938 = vadd.f32 %v915, %v936
    %v939 = vxor.u32 %v938, 2147483648
    %v940 = vmul.f32 %v939, 1.442695
    %v941 = vpow.pop %v940
    %v942 = vadd.f32 %v941, 1.0
    %v943 = vrcp.pop %v942
    %v944 = vmul.f32 %v942, %v943
    %v945 = vsub.f32 1.0, %v944
    %v946 = vmul.f32 %v943, %v945
    %v947 = vadd.f32 %v943, %v946
    %vm948 = vweird.f32 %v942
    %vm949 = vweird.f32 %v943
    %vm950 = vmor %vm948, %vm949
    %v951 = vsel %vm950, %v943, %v947
    %v952 = vand.u32 2147483647, %v942
    %vm953 = vcmp.eq.f32.partialorder %v952, 8.507059e+37
    %v954 = vand.u32 %v942, 2147483648
    %v955 = vor.u32 1.1754944e-38, %v954
    %v956 = vsel %vm953, %v955, %v951
    %v957 = vmul.f32 1.0, %v956
    %959 = vrot.lane.b32.xlu0 %v936, 64
    %v960 = vpop.permute.xlu0 %959
    %v962 = vmul.f32 %v957, %v960
    %964 = vrot.lane.b32.xlu0 %v962, 64
    %v965 = vpop.permute.xlu0 %964
    %v967 = vadd.f32 %v915, %v965
    %v968 = vtanh.pop %v967
    %v969 = vsub.f32 1.0, %v957
    %971 = vrot.lane.b32.xlu0 %v968, 96
    %v972 = vpop.permute.xlu0 %971
    %v974 = vmul.f32 %v969, %v972
    %v975 = vmul.f32 %v957, %v842
    %v976 = vadd.f32 %v974, %v975
    %978 = vrot.lane.b32.xlu0 %v914, 96
    %v979 = vpop.permute.xlu0 %978
    %981 = vst.msk [vmem:[#allocation10 + $0xa] sm:$0x3] %vm310, %v979
    %983 = vrot.lane.b32.xlu0 %v976, 96
    %v984 = vpop.permute.xlu0 %983
    %986 = vst.msk [vmem:[#allocation3 + $0x4] sm:$0x3] %vm310, %v984
    %v987 = vld [vmem:[#allocation2 + $0xc] sm:$0x3]
    %v988 = vsel %vm84, %v979, 0
    %990 = vmatpush.msra.mxu0 0.0
    %991 = vmatpush.msra.mxu0 0.0
    %992 = vmatpush.msra.mxu0 0.0
    %993 = vmatpush.msra.mxu0 0.0
    %994 = vmatpush.msra.mxu0 0.0
    %995 = vmatpush.msra.mxu0 0.0
    %996 = vmatpush.msra.mxu0 0.0
    %997 = vmatpush.msra.mxu0 0.0
    %998 = vmatpush.msra.mxu0 0.0
    %999 = vmatpush.msra.mxu0 0.0
    %1000 = vmatpush.msra.mxu0 0.0
    %1001 = vmatpush.msra.mxu0 0.0
    %1002 = vmatpush.msra.mxu0 %v156
    %1003 = vmatpush.msra.mxu0 %v155
    %1004 = vmatpush.msra.mxu0 %v154
    %1005 = vmatpush.msra.mxu0 %v153
    %1006 = vmatmul.f32.gmra.mxu0 %v988
    %v1007 = vpop.f32.mrf.mxu0
    %v1008 = vadd.f32 %v170, %v1007
    %1009 = vdwg.mxu0
    %v1010 = vadd.f32 %v987, %v1008
    %v1011 = vxor.u32 %v1010, 2147483648
    %v1012 = vmul.f32 %v1011, 1.442695
    %v1013 = vpow.pop %v1012
    %v1014 = vadd.f32 %v1013, 1.0
    %v1015 = vrcp.pop %v1014
    %v1016 = vmul.f32 %v1014, %v1015
    %v1017 = vsub.f32 1.0, %v1016
    %v1018 = vmul.f32 %v1015, %v1017
    %v1019 = vadd.f32 %v1015, %v1018
    %vm1020 = vweird.f32 %v1014
    %vm1021 = vweird.f32 %v1015
    %vm1022 = vmor %vm1020, %vm1021
    %v1023 = vsel %vm1022, %v1015, %v1019
    %v1024 = vand.u32 2147483647, %v1014
    %vm1025 = vcmp.eq.f32.partialorder %v1024, 8.507059e+37
    %v1026 = vand.u32 %v1014, 2147483648
    %v1027 = vor.u32 1.1754944e-38, %v1026
    %v1028 = vsel %vm1025, %v1027, %v1023
    %v1029 = vmul.f32 1.0, %v1028
    %1031 = vrot.lane.b32.xlu0 %v1008, 64
    %v1032 = vpop.permute.xlu0 %1031
    %v1034 = vmul.f32 %v1029, %v1032
    %1036 = vrot.lane.b32.xlu0 %v1034, 64
    %v1037 = vpop.permute.xlu0 %1036
    %v1039 = vadd.f32 %v987, %v1037
    %v1040 = vtanh.pop %v1039
    %v1041 = vsub.f32 1.0, %v1029
    %1043 = vrot.lane.b32.xlu0 %v1040, 96
    %v1044 = vpop.permute.xlu0 %1043
    %v1046 = vmul.f32 %v1041, %v1044
    %v1047 = vmul.f32 %v1029, %v914
    %v1048 = vadd.f32 %v1046, %v1047
    %v1049 = vld [vmem:[%s150 + $0x2] sm:$0x3]
    %v1050 = vsel %vm84, %v984, 0
    %1052 = vmatpush.msra.mxu0 0.0
    %1053 = vmatpush.msra.mxu0 0.0
    %1054 = vmatpush.msra.mxu0 0.0
    %1055 = vmatpush.msra.mxu0 0.0
    %1056 = vmatpush.msra.mxu0 0.0
    %1057 = vmatpush.msra.mxu0 0.0
    %1058 = vmatpush.msra.mxu0 0.0
    %1059 = vmatpush.msra.mxu0 0.0
    %1060 = vmatpush.msra.mxu0 0.0
    %1061 = vmatpush.msra.mxu0 0.0
    %1062 = vmatpush.msra.mxu0 0.0
    %1063 = vmatpush.msra.mxu0 0.0
    %1064 = vmatpush.msra.mxu0 %v161
    %1065 = vmatpush.msra.mxu0 %v160
    %1066 = vmatpush.msra.mxu0 %v159
    %1067 = vmatpush.msra.mxu0 %v158
    %1068 = vmatmul.f32.gmra.mxu0 %v1050
    %v1069 = vpop.f32.mrf.mxu0
    %v1070 = vadd.f32 %v239, %v1069
    %1071 = vdwg.mxu0
    %v1072 = vadd.f32 %v1049, %v1070
    %v1073 = vxor.u32 %v1072, 2147483648
    %v1074 = vmul.f32 %v1073, 1.442695
    %v1075 = vpow.pop %v1074
    %v1076 = vadd.f32 %v1075, 1.0
    %v1077 = vrcp.pop %v1076
    %v1078 = vmul.f32 %v1076, %v1077
    %v1079 = vsub.f32 1.0, %v1078
    %v1080 = vmul.f32 %v1077, %v1079
    %v1081 = vadd.f32 %v1077, %v1080
    %vm1082 = vweird.f32 %v1076
    %vm1083 = vweird.f32 %v1077
    %vm1084 = vmor %vm1082, %vm1083
    %v1085 = vsel %vm1084, %v1077, %v1081
    %v1086 = vand.u32 2147483647, %v1076
    %vm1087 = vcmp.eq.f32.partialorder %v1086, 8.507059e+37
    %v1088 = vand.u32 %v1076, 2147483648
    %v1089 = vor.u32 1.1754944e-38, %v1088
    %v1090 = vsel %vm1087, %v1089, %v1085
    %v1091 = vmul.f32 1.0, %v1090
    %1093 = vrot.lane.b32.xlu0 %v1070, 64
    %v1094 = vpop.permute.xlu0 %1093
    %v1096 = vmul.f32 %v1091, %v1094
    %1098 = vrot.lane.b32.xlu0 %v1096, 64
    %v1099 = vpop.permute.xlu0 %1098
    %v1101 = vadd.f32 %v1049, %v1099
    %v1102 = vtanh.pop %v1101
    %v1103 = vsub.f32 1.0, %v1091
    %1105 = vrot.lane.b32.xlu0 %v1102, 96
    %v1106 = vpop.permute.xlu0 %1105
    %v1108 = vmul.f32 %v1103, %v1106
    %v1109 = vmul.f32 %v1091, %v976
    %v1110 = vadd.f32 %v1108, %v1109
    %1112 = vrot.lane.b32.xlu0 %v1048, 96
    %v1113 = vpop.permute.xlu0 %1112
    %1115 = vst.msk [vmem:[#allocation10 + $0xc] sm:$0x3] %vm310, %v1113
    %1117 = vrot.lane.b32.xlu0 %v1110, 96
    %v1118 = vpop.permute.xlu0 %1117
    %1120 = vst.msk [vmem:[#allocation3 + $0x2] sm:$0x3] %vm310, %v1118
    %v1121 = vld [vmem:[#allocation2 + $0xe] sm:$0x3]
    %v1122 = vsel %vm84, %v1113, 0
    %1124 = vmatpush.msra.mxu0 0.0
    %1125 = vmatpush.msra.mxu0 0.0
    %1126 = vmatpush.msra.mxu0 0.0
    %1127 = vmatpush.msra.mxu0 0.0
    %1128 = vmatpush.msra.mxu0 0.0
    %1129 = vmatpush.msra.mxu0 0.0
    %1130 = vmatpush.msra.mxu0 0.0
    %1131 = vmatpush.msra.mxu0 0.0
    %1132 = vmatpush.msra.mxu0 0.0
    %1133 = vmatpush.msra.mxu0 0.0
    %1134 = vmatpush.msra.mxu0 0.0
    %1135 = vmatpush.msra.mxu0 0.0
    %1136 = vmatpush.msra.mxu0 %v156
    %1137 = vmatpush.msra.mxu0 %v155
    %1138 = vmatpush.msra.mxu0 %v154
    %1139 = vmatpush.msra.mxu0 %v153
    %1140 = vmatmul.f32.gmra.mxu0 %v1122
    %v1141 = vpop.f32.mrf.mxu0
    %v1142 = vadd.f32 %v170, %v1141
    %1143 = vdwg.mxu0
    %v1144 = vadd.f32 %v1121, %v1142
    %v1145 = vxor.u32 %v1144, 2147483648
    %v1146 = vmul.f32 %v1145, 1.442695
    %v1147 = vpow.pop %v1146
    %v1148 = vadd.f32 %v1147, 1.0
    %v1149 = vrcp.pop %v1148
    %v1150 = vmul.f32 %v1148, %v1149
    %v1151 = vsub.f32 1.0, %v1150
    %v1152 = vmul.f32 %v1149, %v1151
    %v1153 = vadd.f32 %v1149, %v1152
    %vm1154 = vweird.f32 %v1148
    %vm1155 = vweird.f32 %v1149
    %vm1156 = vmor %vm1154, %vm1155
    %v1157 = vsel %vm1156, %v1149, %v1153
    %v1158 = vand.u32 2147483647, %v1148
    %vm1159 = vcmp.eq.f32.partialorder %v1158, 8.507059e+37
    %v1160 = vand.u32 %v1148, 2147483648
    %v1161 = vor.u32 1.1754944e-38, %v1160
    %v1162 = vsel %vm1159, %v1161, %v1157
    %v1163 = vmul.f32 1.0, %v1162
    %1165 = vrot.lane.b32.xlu0 %v1142, 64
    %v1166 = vpop.permute.xlu0 %1165
    %v1168 = vmul.f32 %v1163, %v1166
    %1170 = vrot.lane.b32.xlu0 %v1168, 64
    %v1171 = vpop.permute.xlu0 %1170
    %v1173 = vadd.f32 %v1121, %v1171
    %v1174 = vtanh.pop %v1173
    %v1175 = vsub.f32 1.0, %v1163
    %1177 = vrot.lane.b32.xlu0 %v1174, 96
    %v1178 = vpop.permute.xlu0 %1177
    %v1180 = vmul.f32 %v1175, %v1178
    %v1181 = vmul.f32 %v1163, %v1048
    %v1182 = vadd.f32 %v1180, %v1181
    %v1183 = vld [vmem:[%s150] sm:$0x3]
    %v1184 = vsel %vm84, %v1118, 0
    %1186 = vmatpush.msra.mxu0 0.0
    %1187 = vmatpush.msra.mxu0 0.0
    %1188 = vmatpush.msra.mxu0 0.0
    %1189 = vmatpush.msra.mxu0 0.0
    %1190 = vmatpush.msra.mxu0 0.0
    %1191 = vmatpush.msra.mxu0 0.0
    %1192 = vmatpush.msra.mxu0 0.0
    %1193 = vmatpush.msra.mxu0 0.0
    %1194 = vmatpush.msra.mxu0 0.0
    %1195 = vmatpush.msra.mxu0 0.0
    %1196 = vmatpush.msra.mxu0 0.0
    %1197 = vmatpush.msra.mxu0 0.0
    %1198 = vmatpush.msra.mxu0 %v161
    %1199 = vmatpush.msra.mxu0 %v160
    %1200 = vmatpush.msra.mxu0 %v159
    %1201 = vmatpush.msra.mxu0 %v158
    %1202 = vmatmul.f32.gmra.mxu0 %v1184
    %v1203 = vpop.f32.mrf.mxu0
    %v1204 = vadd.f32 %v239, %v1203
    %1205 = vdwg.mxu0
    %v1206 = vadd.f32 %v1183, %v1204
    %v1207 = vxor.u32 %v1206, 2147483648
    %v1208 = vmul.f32 %v1207, 1.442695
    %v1209 = vpow.pop %v1208
    %v1210 = vadd.f32 %v1209, 1.0
    %v1211 = vrcp.pop %v1210
    %v1212 = vmul.f32 %v1210, %v1211
    %v1213 = vsub.f32 1.0, %v1212
    %v1214 = vmul.f32 %v1211, %v1213
    %v1215 = vadd.f32 %v1211, %v1214
    %vm1216 = vweird.f32 %v1210
    %vm1217 = vweird.f32 %v1211
    %vm1218 = vmor %vm1216, %vm1217
    %v1219 = vsel %vm1218, %v1211, %v1215
    %v1220 = vand.u32 2147483647, %v1210
    %vm1221 = vcmp.eq.f32.partialorder %v1220, 8.507059e+37
    %v1222 = vand.u32 %v1210, 2147483648
    %v1223 = vor.u32 1.1754944e-38, %v1222
    %v1224 = vsel %vm1221, %v1223, %v1219
    %v1225 = vmul.f32 1.0, %v1224
    %1227 = vrot.lane.b32.xlu0 %v1204, 64
    %v1228 = vpop.permute.xlu0 %1227
    %v1230 = vmul.f32 %v1225, %v1228
    %1232 = vrot.lane.b32.xlu0 %v1230, 64
    %v1233 = vpop.permute.xlu0 %1232
    %v1235 = vadd.f32 %v1183, %v1233
    %v1236 = vtanh.pop %v1235
    %v1237 = vsub.f32 1.0, %v1225
    %1239 = vrot.lane.b32.xlu0 %v1236, 96
    %v1240 = vpop.permute.xlu0 %1239
    %v1242 = vmul.f32 %v1237, %v1240
    %v1243 = vmul.f32 %v1225, %v1110
    %v1244 = vadd.f32 %v1242, %v1243
    %1246 = vrot.lane.b32.xlu0 %v1182, 96
    %v1247 = vpop.permute.xlu0 %1246
    %1249 = vst.msk [vmem:[#allocation10 + $0xe] sm:$0x3] %vm310, %v1247
    %1251 = vrot.lane.b32.xlu0 %v1244, 96
    %v1252 = vpop.permute.xlu0 %1251
    %1254 = vst.msk [vmem:[#allocation3] sm:$0x3] %vm310, %v1252
    %v1255 = vld [vmem:[#allocation3] sm:$0xff]
    %v1256 = vld [vmem:[#allocation3 + $0x8] sm:$0xff]
    %1259 = vrot.lane.b32.xlu0 %v1255, 32
    %v1260 = vpop.permute.xlu0 %1259
    %1261 = vrot.lane.b32.xlu0 %v1256, 32
    %v1262 = vpop.permute.xlu0 %1261
    %vm1265 = vcmask 523520
    %1266 = vst.msk [vmem:[#allocation10] sm:$0xff] %vm1265, %v1260
    %1267 = vst.msk [vmem:[#allocation10 + $0x8] sm:$0xff] %vm1265, %v1262
    %1268 = vst.msk [vmem:[#allocation11] sm:$0x3] %vm310, %v1247
    %s1269 = scalar_lea.vmem [#allocation11], 2
    %1270 = vst.msk [vmem:[%s1269] sm:$0x3] %vm310, %v1252
    // Predicated region
    $region38: #{encoder_forward.1} parent=1 // pred_check
      _
    $region39: #{encoder_forward.1} parent=1 // pred_check_branch
      %1272 = sbr.rel (0) target = $region41
    $region40: #{encoder_forward.1} parent=1 // pred_region
      %1274 = vsyncadd [#allocation6], 0
      %s1275 = sshll.u32 [#allocation10], 4
      %s1276 = int_to_ptr.vmem [resolvable:$true] %s1275
      %s1277 = sshll.u32 %s6, 4
      %s1278 = int_to_ptr.hbm [resolvable:$true] %s1277
      %1283 = dma.vmem_to_hbm [thread:$0]  %s1276, 256, %s1278, [#allocation6], 128, 128, 8
    $region41: #{encoder_forward.1} parent=1 // pred_fallthru
      _
    // Predicated region
    $region42: #{encoder_forward.1} parent=1 // pred_check
      _
    $region43: #{encoder_forward.1} parent=1 // pred_check_branch
      %1285 = sbr.rel (0) target = $region45
    $region44: #{encoder_forward.1} parent=1 // pred_region
      %1287 = vsyncadd [#allocation12], 0
      %s1288 = sshll.u32 [#allocation11], 4
      %s1289 = int_to_ptr.vmem [resolvable:$true] %s1288
      %s1290 = sshll.u32 %s7, 4
      %s1291 = int_to_ptr.hbm [resolvable:$true] %s1290
      %1296 = dma.vmem_to_hbm [thread:$0]  %s1289, 64, %s1291, [#allocation12], 32, 32, 2
    $region45: #{encoder_forward.1} parent=1 // pred_fallthru
      _
    // Predicated region
    $region46: #{encoder_forward.1} parent=1 // pred_check
      _
    $region47: #{encoder_forward.1} parent=1 // pred_check_branch
      %1298 = sbr.rel (0) target = $region49
    $region48: #{encoder_forward.1} parent=1 // pred_region
      %1300 = dma.done [#allocation6], 256
    $region49: #{encoder_forward.1} parent=1 // pred_fallthru
      _
    // Predicated region
    $region50: #{encoder_forward.1} parent=1 // pred_check
      _
    $region51: #{encoder_forward.1} parent=1 // pred_check_branch
      %1302 = sbr.rel (0) target = $region53
    $region52: #{encoder_forward.1} parent=1 // pred_region
      %1304 = dma.done [#allocation12], 64
    $region53: #{encoder_forward.1} parent=1 // pred_fallthru
      _
    %1305 = vsyncpa [#allocation5], 1
    %1306 = vsyncpa [#allocation8], 1
    %1307 = vsyncpa [#allocation6], 1
    %1308 = vsyncpa [#allocation12], 1

</llo_original>
